<compile_context>
chip_gen: v7x
topology: tpu7x:2x2x1
jax: 0.10.0
libtpu: 0.0.40
codegen_flags: <defaults>
</compile_context>

<pallas_src>
import functools

import jax
import jax.numpy as jnp
from jax.experimental import pallas as pl
from jax.experimental.pallas import tpu as pltpu


def _round_up(x, m):
    return ((x + m - 1) // m) * m


# --------------------------------------------------------------------------
# Pallas kernel: out = act(x @ w + b)  (M-tiled grid, f32 accumulation)
# --------------------------------------------------------------------------
def _matmul_bias_act_kernel(x_ref, w_ref, b_ref, o_ref, *, apply_relu):
    acc = jnp.dot(x_ref[...], w_ref[...], preferred_element_type=jnp.float32)
    acc = acc + b_ref[...]                      # (1, N) bias broadcasts over rows
    if apply_relu:
        acc = jnp.maximum(acc, 0.0)
    o_ref[...] = acc.astype(o_ref.dtype)


def matmul_bias_act(x, w, b, *, apply_relu, out_dtype=jnp.bfloat16, tile_m=512):
    """x: (M, K) bf16, w: (K, N) bf16 (pre-transposed), b: (N,) f32 -> (M, N)."""
    M, K = x.shape
    Kw, N = w.shape
    assert K == Kw
    tm = min(tile_m, _round_up(M, 8))           # M tile, multiple of 8 sublanes
    Mp = _round_up(M, tm)
    if Mp != M:
        x = jnp.pad(x, ((0, Mp - M), (0, 0)))
    b2 = b.reshape(1, N).astype(jnp.float32)
    bytes_accessed = (Mp * K * x.dtype.itemsize + K * N * w.dtype.itemsize
                      + N * 4 + Mp * N * jnp.dtype(out_dtype).itemsize)
    out = pl.pallas_call(
        functools.partial(_matmul_bias_act_kernel, apply_relu=apply_relu),
        out_shape=jax.ShapeDtypeStruct((Mp, N), out_dtype),
        grid=(Mp // tm,),
        in_specs=[
            pl.BlockSpec((tm, K), lambda i: (i, 0)),   # activations: tiled over M
            pl.BlockSpec((K, N), lambda i: (0, 0)),    # weights pinned in VMEM
            pl.BlockSpec((1, N), lambda i: (0, 0)),    # bias pinned
        ],
        out_specs=pl.BlockSpec((tm, N), lambda i: (i, 0)),
        compiler_params=pltpu.CompilerParams(dimension_semantics=("parallel",)),
        cost_estimate=pl.CostEstimate(flops=2 * Mp * K * N, transcendentals=0,
                                      bytes_accessed=bytes_accessed),
    )(x, w, b2)
    return out if Mp == M else out[:M]


# --------------------------------------------------------------------------
# Pallas kernel: fused fc1(ReLU)+fc2, hidden stays in VMEM, lane-dense output
# --------------------------------------------------------------------------
def _fc_fused_kernel(x_ref, w1_ref, b1_ref, w2_ref, b2_ref, o_ref):
    h = jnp.dot(x_ref[...], w1_ref[...], preferred_element_type=jnp.float32)
    h = jnp.maximum(h + b1_ref[...], 0.0)
    q = jnp.dot(h.astype(w2_ref.dtype), w2_ref[...],
                preferred_element_type=jnp.float32)
    o_ref[...] = (q + b2_ref[...]).astype(o_ref.dtype)


def fc_fused(x, w1, b1, w2p, b2p, n_actions, *, tile_b=256):
    """x: (B, K1) bf16, w1: (K1, H) bf16, b1: (H,) f32,
    w2p: (H, NP) bf16 lane-padded, b2p: (NP,) f32 -> (B, n_actions) f32."""
    B, K1 = x.shape
    H = w1.shape[1]
    NP = w2p.shape[1]
    tb = min(tile_b, _round_up(B, 8))           # batch tile, multiple of 8
    Bp = _round_up(B, tb)
    if Bp != B:
        x = jnp.pad(x, ((0, Bp - B), (0, 0)))
    b1r = b1.reshape(1, H).astype(jnp.float32)
    b2r = b2p.reshape(1, NP).astype(jnp.float32)
    out = pl.pallas_call(
        _fc_fused_kernel,
        out_shape=jax.ShapeDtypeStruct((Bp, NP), jnp.float32),
        grid=(Bp // tb,),
        in_specs=[
            pl.BlockSpec((tb, K1), lambda i: (i, 0)),  # activations tiled over B
            pl.BlockSpec((K1, H), lambda i: (0, 0)),   # fc1 weights pinned
            pl.BlockSpec((1, H), lambda i: (0, 0)),
            pl.BlockSpec((H, NP), lambda i: (0, 0)),   # fc2 weights pinned
            pl.BlockSpec((1, NP), lambda i: (0, 0)),
        ],
        out_specs=pl.BlockSpec((tb, NP), lambda i: (i, 0)),
        compiler_params=pltpu.CompilerParams(dimension_semantics=("parallel",)),
        cost_estimate=pl.CostEstimate(
            flops=2 * Bp * K1 * H + 2 * Bp * H * NP, transcendentals=0,
            bytes_accessed=(Bp * K1 + K1 * H + H * NP) * 2 + (H + NP) * 4 + Bp * NP * 4),
    )(x, w1, b1r, w2p, b2r)
    return out[:B, :n_actions]


# --------------------------------------------------------------------------
# NHWC im2col (JAX glue; feature order = (kh, kw, c))
# --------------------------------------------------------------------------
def _im2col_nhwc(x, kh, kw, stride):
    N, H, W, C = x.shape
    OH = (H - kh) // stride + 1
    OW = (W - kw) // stride + 1
    cols = []
    for i in range(kh):
        for j in range(kw):
            cols.append(x[:, i:i + stride * OH:stride, j:j + stride * OW:stride, :])
    p = jnp.stack(cols, axis=3)                  # (N, OH, OW, KH*KW, C)
    return p.reshape(N * OH * OW, kh * kw * C), OH, OW


def conv2d_nhwc(x, wmat, b, kh, kw, stride, *, apply_relu=True):
    """x: (N, H, W, C) bf16, wmat: (KH*KW*C, OC) bf16, b: (OC,) f32 -> NHWC out."""
    N = x.shape[0]
    patches, OH, OW = _im2col_nhwc(x, kh, kw, stride)
    out = matmul_bias_act(patches, wmat, b, apply_relu=apply_relu)
    return out.reshape(N, OH, OW, -1)


# --------------------------------------------------------------------------
# Parameters (PyTorch layout -> one-time kernel-friendly prep)
# --------------------------------------------------------------------------
def _conv_out_hw(H, W):
    h1 = (H - 8) // 4 + 1; w1 = (W - 8) // 4 + 1
    h2 = (h1 - 4) // 2 + 1; w2 = (w1 - 4) // 2 + 1
    h3 = h2 - 3 + 1;        w3 = w2 - 3 + 1
    return h3, w3


def init_dqn_params_torch(key, input_shape, n_actions):
    """Random params with exactly the PyTorch module's shapes/layout."""
    C, H, W = input_shape
    k = jax.random.split(key, 10)
    s = 0.05
    h3, w3 = _conv_out_hw(H, W)
    conv_out_size = 64 * h3 * w3
    return {
        "cw1": s * jax.random.normal(k[0], (32, C, 8, 8), jnp.float32),
        "cb1": s * jax.random.normal(k[1], (32,), jnp.float32),
        "cw2": s * jax.random.normal(k[2], (64, 32, 4, 4), jnp.float32),
        "cb2": s * jax.random.normal(k[3], (64,), jnp.float32),
        "cw3": s * jax.random.normal(k[4], (64, 64, 3, 3), jnp.float32),
        "cb3": s * jax.random.normal(k[5], (64,), jnp.float32),
        "fw1": s * jax.random.normal(k[6], (512, conv_out_size), jnp.float32),
        "fb1": s * jax.random.normal(k[7], (512,), jnp.float32),
        "fw2": s * jax.random.normal(k[8], (n_actions, 512), jnp.float32),
        "fb2": s * jax.random.normal(k[9], (n_actions,), jnp.float32),
    }


def prepare_params(tp, input_shape, n_actions, lane_pad=128):
    """One-time: pre-transpose to matmul layout, bf16 weights, permute fc1
    columns to NHWC flatten order, lane-pad fc2 to 128."""
    C, H, W = input_shape
    h3, w3 = _conv_out_hw(H, W)

    def conv_w(w):  # (OC, IC, KH, KW) -> (KH*KW*IC, OC), matches (kh, kw, c) patches
        OC, IC, KH, KW = w.shape
        return jnp.transpose(w, (2, 3, 1, 0)).reshape(KH * KW * IC, OC).astype(jnp.bfloat16)

    # fw1 columns are (C, H, W)-ordered in PyTorch; permute once to NHWC order.
    fw1 = tp["fw1"].reshape(512, 64, h3, w3).transpose(0, 2, 3, 1).reshape(512, -1)
    fw1 = fw1.T.astype(jnp.bfloat16)                              # (conv_out, 512)

    np_pad = _round_up(max(n_actions, 1), lane_pad)
    fw2 = jnp.zeros((512, np_pad), jnp.float32).at[:, :n_actions].set(tp["fw2"].T)
    fb2 = jnp.zeros((np_pad,), jnp.float32).at[:n_actions].set(tp["fb2"])

    return {
        "cw1": conv_w(tp["cw1"]), "cb1": tp["cb1"].astype(jnp.float32),
        "cw2": conv_w(tp["cw2"]), "cb2": tp["cb2"].astype(jnp.float32),
        "cw3": conv_w(tp["cw3"]), "cb3": tp["cb3"].astype(jnp.float32),
        "fw1": fw1, "fb1": tp["fb1"].astype(jnp.float32),
        "fw2": fw2.astype(jnp.bfloat16), "fb2": fb2,
    }


# --------------------------------------------------------------------------
# Forward pass (same semantics as the PyTorch DQN.forward)
# --------------------------------------------------------------------------
@functools.partial(jax.jit, static_argnames=("n_actions",))
def dqn_forward(params, x, *, n_actions):
    # x: (N, C, H, W) f32, PyTorch layout.  Single transpose to NHWC, bf16.
    xh = jnp.transpose(x, (0, 2, 3, 1)).astype(jnp.bfloat16)
    h = conv2d_nhwc(xh, params["cw1"], params["cb1"], 8, 8, 4)
    h = conv2d_nhwc(h, params["cw2"], params["cb2"], 4, 4, 2)
    h = conv2d_nhwc(h, params["cw3"], params["cb3"], 3, 3, 1)
    flat = h.reshape(h.shape[0], -1)        # NHWC flatten; fw1 pre-permuted to match
    return fc_fused(flat, params["fw1"], params["fb1"],
                    params["fw2"], params["fb2"], n_actions)


if __name__ == "__main__":
    # Small Atari-like input: 4 stacked frames of 36x36, batch of 2.
    # (36 is the smallest spatial size that survives the 8/4 -> 4/2 -> 3/1
    #  conv stack: 36 -> 8 -> 3 -> 1; conv_out_size = 64)
    input_shape = (4, 36, 36)
    n_actions = 6
    batch = 2

    key = jax.random.PRNGKey(0)
    pkey, xkey = jax.random.split(key)
    torch_params = init_dqn_params_torch(pkey, input_shape, n_actions)
    params = prepare_params(torch_params, input_shape, n_actions)
    x = jax.random.normal(xkey, (batch,) + input_shape, jnp.float32)

    q_values = jax.block_until_ready(dqn_forward(params, x, n_actions=n_actions))
    assert q_values.shape == (batch, n_actions)
    assert q_values.dtype == jnp.float32
    print("KERNEL_OK")
</pallas_src>

<mosaic_0001>
module attributes {stable_mosaic.version = 11 : i64} {
  func.func @_matmul_bias_act_kernel(%arg0: i32, %arg1: memref<128x256xbf16, #tpu.memory_space<vmem>>, %arg2: memref<256x32xbf16, #tpu.memory_space<vmem>>, %arg3: memref<1x32xf32, #tpu.memory_space<vmem>>, %arg4: memref<128x32xbf16, #tpu.memory_space<vmem>>) attributes {dimension_semantics = [#tpu.dimension_semantics<parallel>], iteration_bounds = array<i64: 1>, scalar_prefetch = 0 : i64, scratch_operands = 0 : i64, tpu.core_type = #tpu.core_type<tc>, window_params = [{transform_indices = @transform_0, window_bounds = array<i64: 128, 256>}, {pipeline_mode = #tpu.pipeline_mode<synchronous>, transform_indices = @transform_1, window_bounds = array<i64: 256, 32>}, {pipeline_mode = #tpu.pipeline_mode<synchronous>, transform_indices = @transform_2, window_bounds = array<i64: 1, 32>}, {transform_indices = @transform_3, window_bounds = array<i64: 128, 32>}]} {
    %c0 = arith.constant 0 : index
    %c0_0 = arith.constant 0 : index
    %0 = vector.load %arg1[%c0, %c0_0] : memref<128x256xbf16, #tpu.memory_space<vmem>>, vector<128x256xbf16>
    %c0_1 = arith.constant 0 : index
    %c0_2 = arith.constant 0 : index
    %1 = vector.load %arg2[%c0_1, %c0_2] : memref<256x32xbf16, #tpu.memory_space<vmem>>, vector<256x32xbf16>
    %cst = arith.constant dense<0.000000e+00> : vector<128x32xf32>
    %2 = tpu.matmul %0, %1, %cst {dimension_numbers = #tpu.dot_dimension_numbers<[1], [0], [0], [1], [0, 0, 1, 1], [], []>} : vector<128x256xbf16>, vector<256x32xbf16>, vector<128x32xf32> -> vector<128x32xf32>
    %c0_3 = arith.constant 0 : index
    %c0_4 = arith.constant 0 : index
    %3 = vector.load %arg3[%c0_3, %c0_4] : memref<1x32xf32, #tpu.memory_space<vmem>>, vector<1x32xf32>
    %4 = vector.broadcast %3 : vector<1x32xf32> to vector<128x32xf32>
    %5 = arith.addf %2, %4 : vector<128x32xf32>
    %cst_5 = arith.constant 0.000000e+00 : f32
    %6 = vector.broadcast %cst_5 : f32 to vector<128x32xf32>
    %7 = arith.maximumf %5, %6 : vector<128x32xf32>
    %8 = arith.truncf %7 : vector<128x32xf32> to vector<128x32xbf16>
    %c0_6 = arith.constant 0 : index
    %c0_7 = arith.constant 0 : index
    %9 = vector.load %arg4[%c0_6, %c0_7] : memref<128x32xbf16, #tpu.memory_space<vmem>>, vector<128x32xbf16>
    tpu.vector_store %arg4[%c0_6, %c0_7], %8 {strides = array<i32>} : memref<128x32xbf16, #tpu.memory_space<vmem>>, vector<128x32xbf16>,
    return
  }
  func.func @transform_0(%arg0: i32) -> (i32, i32) {
    %c0_i32 = arith.constant 0 : i32
    %c0_i32_0 = arith.constant 0 : i32
    return %arg0, %c0_i32 : i32, i32
  }
  func.func @transform_1(%arg0: i32) -> (i32, i32) {
    %c0_i32 = arith.constant 0 : i32
    %c0_i32_0 = arith.constant 0 : i32
    %c0_i32_1 = arith.constant 0 : i32
    return %c0_i32, %c0_i32_0 : i32, i32
  }
  func.func @transform_2(%arg0: i32) -> (i32, i32) {
    %c0_i32 = arith.constant 0 : i32
    %c0_i32_0 = arith.constant 0 : i32
    %c0_i32_1 = arith.constant 0 : i32
    return %c0_i32, %c0_i32_0 : i32, i32
  }
  func.func @transform_3(%arg0: i32) -> (i32, i32) {
    %c0_i32 = arith.constant 0 : i32
    %c0_i32_0 = arith.constant 0 : i32
    return %arg0, %c0_i32 : i32, i32
  }
}

module attributes {stable_mosaic.version = 11 : i64} {
  func.func @_matmul_bias_act_kernel(%arg0: i32, %arg1: memref<24x512xbf16, #tpu.memory_space<vmem>>, %arg2: memref<512x64xbf16, #tpu.memory_space<vmem>>, %arg3: memref<1x64xf32, #tpu.memory_space<vmem>>, %arg4: memref<24x64xbf16, #tpu.memory_space<vmem>>) attributes {dimension_semantics = [#tpu.dimension_semantics<parallel>], iteration_bounds = array<i64: 1>, scalar_prefetch = 0 : i64, scratch_operands = 0 : i64, tpu.core_type = #tpu.core_type<tc>, window_params = [{transform_indices = @transform_0, window_bounds = array<i64: 24, 512>}, {pipeline_mode = #tpu.pipeline_mode<synchronous>, transform_indices = @transform_1, window_bounds = array<i64: 512, 64>}, {pipeline_mode = #tpu.pipeline_mode<synchronous>, transform_indices = @transform_2, window_bounds = array<i64: 1, 64>}, {transform_indices = @transform_3, window_bounds = array<i64: 24, 64>}]} {
    %c0 = arith.constant 0 : index
    %c0_0 = arith.constant 0 : index
    %0 = vector.load %arg1[%c0, %c0_0] : memref<24x512xbf16, #tpu.memory_space<vmem>>, vector<24x512xbf16>
    %c0_1 = arith.constant 0 : index
    %c0_2 = arith.constant 0 : index
    %1 = vector.load %arg2[%c0_1, %c0_2] : memref<512x64xbf16, #tpu.memory_space<vmem>>, vector<512x64xbf16>
    %cst = arith.constant dense<0.000000e+00> : vector<24x64xf32>
    %2 = tpu.matmul %0, %1, %cst {dimension_numbers = #tpu.dot_dimension_numbers<[1], [0], [0], [1], [0, 0, 1, 1], [], []>} : vector<24x512xbf16>, vector<512x64xbf16>, vector<24x64xf32> -> vector<24x64xf32>
    %c0_3 = arith.constant 0 : index
    %c0_4 = arith.constant 0 : index
    %3 = vector.load %arg3[%c0_3, %c0_4] : memref<1x64xf32, #tpu.memory_space<vmem>>, vector<1x64xf32>
    %4 = vector.broadcast %3 : vector<1x64xf32> to vector<24x64xf32>
    %5 = arith.addf %2, %4 : vector<24x64xf32>
    %cst_5 = arith.constant 0.000000e+00 : f32
    %6 = vector.broadcast %cst_5 : f32 to vector<24x64xf32>
    %7 = arith.maximumf %5, %6 : vector<24x64xf32>
    %8 = arith.truncf %7 : vector<24x64xf32> to vector<24x64xbf16>
    %c0_6 = arith.constant 0 : index
    %c0_7 = arith.constant 0 : index
    %9 = vector.load %arg4[%c0_6, %c0_7] : memref<24x64xbf16, #tpu.memory_space<vmem>>, vector<24x64xbf16>
    tpu.vector_store %arg4[%c0_6, %c0_7], %8 {strides = array<i32>} : memref<24x64xbf16, #tpu.memory_space<vmem>>, vector<24x64xbf16>,
    return
  }
  func.func @transform_0(%arg0: i32) -> (i32, i32) {
    %c0_i32 = arith.constant 0 : i32
    %c0_i32_0 = arith.constant 0 : i32
    return %arg0, %c0_i32 : i32, i32
  }
  func.func @transform_1(%arg0: i32) -> (i32, i32) {
    %c0_i32 = arith.constant 0 : i32
    %c0_i32_0 = arith.constant 0 : i32
    %c0_i32_1 = arith.constant 0 : i32
    return %c0_i32, %c0_i32_0 : i32, i32
  }
  func.func @transform_2(%arg0: i32) -> (i32, i32) {
    %c0_i32 = arith.constant 0 : i32
    %c0_i32_0 = arith.constant 0 : i32
    %c0_i32_1 = arith.constant 0 : i32
    return %c0_i32, %c0_i32_0 : i32, i32
  }
  func.func @transform_3(%arg0: i32) -> (i32, i32) {
    %c0_i32 = arith.constant 0 : i32
    %c0_i32_0 = arith.constant 0 : i32
    return %arg0, %c0_i32 : i32, i32
  }
}

module attributes {stable_mosaic.version = 11 : i64} {
  func.func @_fc_fused_kernel(%arg0: i32, %arg1: memref<8x64xbf16, #tpu.memory_space<vmem>>, %arg2: memref<64x512xbf16, #tpu.memory_space<vmem>>, %arg3: memref<1x512xf32, #tpu.memory_space<vmem>>, %arg4: memref<512x128xbf16, #tpu.memory_space<vmem>>, %arg5: memref<1x128xf32, #tpu.memory_space<vmem>>, %arg6: memref<8x128xf32, #tpu.memory_space<vmem>>) attributes {dimension_semantics = [#tpu.dimension_semantics<parallel>], iteration_bounds = array<i64: 1>, scalar_prefetch = 0 : i64, scratch_operands = 0 : i64, tpu.core_type = #tpu.core_type<tc>, window_params = [{transform_indices = @transform_0, window_bounds = array<i64: 8, 64>}, {pipeline_mode = #tpu.pipeline_mode<synchronous>, transform_indices = @transform_1, window_bounds = array<i64: 64, 512>}, {pipeline_mode = #tpu.pipeline_mode<synchronous>, transform_indices = @transform_2, window_bounds = array<i64: 1, 512>}, {pipeline_mode = #tpu.pipeline_mode<synchronous>, transform_indices = @transform_3, window_bounds = array<i64: 512, 128>}, {pipeline_mode = #tpu.pipeline_mode<synchronous>, transform_indices = @transform_4, window_bounds = array<i64: 1, 128>}, {transform_indices = @transform_5, window_bounds = array<i64: 8, 128>}]} {
    %c0 = arith.constant 0 : index
    %c0_0 = arith.constant 0 : index
    %0 = vector.load %arg1[%c0, %c0_0] : memref<8x64xbf16, #tpu.memory_space<vmem>>, vector<8x64xbf16>
    %c0_1 = arith.constant 0 : index
    %c0_2 = arith.constant 0 : index
    %1 = vector.load %arg2[%c0_1, %c0_2] : memref<64x512xbf16, #tpu.memory_space<vmem>>, vector<64x512xbf16>
    %cst = arith.constant dense<0.000000e+00> : vector<8x512xf32>
    %2 = tpu.matmul %0, %1, %cst {dimension_numbers = #tpu.dot_dimension_numbers<[1], [0], [0], [1], [0, 0, 1, 1], [], []>} : vector<8x64xbf16>, vector<64x512xbf16>, vector<8x512xf32> -> vector<8x512xf32>
    %c0_3 = arith.constant 0 : index
    %c0_4 = arith.constant 0 : index
    %3 = vector.load %arg3[%c0_3, %c0_4] : memref<1x512xf32, #tpu.memory_space<vmem>>, vector<1x512xf32>
    %4 = vector.broadcast %3 : vector<1x512xf32> to vector<8x512xf32>
    %5 = arith.addf %2, %4 : vector<8x512xf32>
    %cst_5 = arith.constant 0.000000e+00 : f32
    %6 = vector.broadcast %cst_5 : f32 to vector<8x512xf32>
    %7 = arith.maximumf %5, %6 : vector<8x512xf32>
    %8 = arith.truncf %7 : vector<8x512xf32> to vector<8x512xbf16>
    %c0_6 = arith.constant 0 : index
    %c0_7 = arith.constant 0 : index
    %9 = vector.load %arg4[%c0_6, %c0_7] : memref<512x128xbf16, #tpu.memory_space<vmem>>, vector<512x128xbf16>
    %cst_8 = arith.constant dense<0.000000e+00> : vector<8x128xf32>
    %10 = tpu.matmul %8, %9, %cst_8 {dimension_numbers = #tpu.dot_dimension_numbers<[1], [0], [0], [1], [0, 0, 1, 1], [], []>} : vector<8x512xbf16>, vector<512x128xbf16>, vector<8x128xf32> -> vector<8x128xf32>
    %c0_9 = arith.constant 0 : index
    %c0_10 = arith.constant 0 : index
    %11 = vector.load %arg5[%c0_9, %c0_10] : memref<1x128xf32, #tpu.memory_space<vmem>>, vector<1x128xf32>
    %12 = vector.broadcast %11 : vector<1x128xf32> to vector<8x128xf32>
    %13 = arith.addf %10, %12 : vector<8x128xf32>
    %c0_11 = arith.constant 0 : index
    %c0_12 = arith.constant 0 : index
    %14 = vector.load %arg6[%c0_11, %c0_12] : memref<8x128xf32, #tpu.memory_space<vmem>>, vector<8x128xf32>
    tpu.vector_store %arg6[%c0_11, %c0_12], %13 {strides = array<i32>} : memref<8x128xf32, #tpu.memory_space<vmem>>, vector<8x128xf32>,
    return
  }
  func.func @transform_0(%arg0: i32) -> (i32, i32) {
    %c0_i32 = arith.constant 0 : i32
    %c0_i32_0 = arith.constant 0 : i32
    return %arg0, %c0_i32 : i32, i32
  }
  func.func @transform_1(%arg0: i32) -> (i32, i32) {
    %c0_i32 = arith.constant 0 : i32
    %c0_i32_0 = arith.constant 0 : i32
    %c0_i32_1 = arith.constant 0 : i32
    return %c0_i32, %c0_i32_0 : i32, i32
  }
  func.func @transform_2(%arg0: i32) -> (i32, i32) {
    %c0_i32 = arith.constant 0 : i32
    %c0_i32_0 = arith.constant 0 : i32
    %c0_i32_1 = arith.constant 0 : i32
    return %c0_i32, %c0_i32_0 : i32, i32
  }
  func.func @transform_3(%arg0: i32) -> (i32, i32) {
    %c0_i32 = arith.constant 0 : i32
    %c0_i32_0 = arith.constant 0 : i32
    %c0_i32_1 = arith.constant 0 : i32
    return %c0_i32, %c0_i32_0 : i32, i32
  }
  func.func @transform_4(%arg0: i32) -> (i32, i32) {
    %c0_i32 = arith.constant 0 : i32
    %c0_i32_0 = arith.constant 0 : i32
    %c0_i32_1 = arith.constant 0 : i32
    return %c0_i32, %c0_i32_0 : i32, i32
  }
  func.func @transform_5(%arg0: i32) -> (i32, i32) {
    %c0_i32 = arith.constant 0 : i32
    %c0_i32_0 = arith.constant 0 : i32
    return %arg0, %c0_i32 : i32, i32
  }
}

module attributes {stable_mosaic.version = 11 : i64} {
  func.func @_matmul_bias_act_kernel(%arg0: i32, %arg1: memref<8x576xbf16, #tpu.memory_space<vmem>>, %arg2: memref<576x64xbf16, #tpu.memory_space<vmem>>, %arg3: memref<1x64xf32, #tpu.memory_space<vmem>>, %arg4: memref<8x64xbf16, #tpu.memory_space<vmem>>) attributes {dimension_semantics = [#tpu.dimension_semantics<parallel>], iteration_bounds = array<i64: 1>, scalar_prefetch = 0 : i64, scratch_operands = 0 : i64, tpu.core_type = #tpu.core_type<tc>, window_params = [{transform_indices = @transform_0, window_bounds = array<i64: 8, 576>}, {pipeline_mode = #tpu.pipeline_mode<synchronous>, transform_indices = @transform_1, window_bounds = array<i64: 576, 64>}, {pipeline_mode = #tpu.pipeline_mode<synchronous>, transform_indices = @transform_2, window_bounds = array<i64: 1, 64>}, {transform_indices = @transform_3, window_bounds = array<i64: 8, 64>}]} {
    %c0 = arith.constant 0 : index
    %c0_0 = arith.constant 0 : index
    %0 = vector.load %arg1[%c0, %c0_0] : memref<8x576xbf16, #tpu.memory_space<vmem>>, vector<8x576xbf16>
    %c0_1 = arith.constant 0 : index
    %c0_2 = arith.constant 0 : index
    %1 = vector.load %arg2[%c0_1, %c0_2] : memref<576x64xbf16, #tpu.memory_space<vmem>>, vector<576x64xbf16>
    %cst = arith.constant dense<0.000000e+00> : vector<8x64xf32>
    %2 = tpu.matmul %0, %1, %cst {dimension_numbers = #tpu.dot_dimension_numbers<[1], [0], [0], [1], [0, 0, 1, 1], [], []>} : vector<8x576xbf16>, vector<576x64xbf16>, vector<8x64xf32> -> vector<8x64xf32>
    %c0_3 = arith.constant 0 : index
    %c0_4 = arith.constant 0 : index
    %3 = vector.load %arg3[%c0_3, %c0_4] : memref<1x64xf32, #tpu.memory_space<vmem>>, vector<1x64xf32>
    %4 = vector.broadcast %3 : vector<1x64xf32> to vector<8x64xf32>
    %5 = arith.addf %2, %4 : vector<8x64xf32>
    %cst_5 = arith.constant 0.000000e+00 : f32
    %6 = vector.broadcast %cst_5 : f32 to vector<8x64xf32>
    %7 = arith.maximumf %5, %6 : vector<8x64xf32>
    %8 = arith.truncf %7 : vector<8x64xf32> to vector<8x64xbf16>
    %c0_6 = arith.constant 0 : index
    %c0_7 = arith.constant 0 : index
    %9 = vector.load %arg4[%c0_6, %c0_7] : memref<8x64xbf16, #tpu.memory_space<vmem>>, vector<8x64xbf16>
    tpu.vector_store %arg4[%c0_6, %c0_7], %8 {strides = array<i32>} : memref<8x64xbf16, #tpu.memory_space<vmem>>, vector<8x64xbf16>,
    return
  }
  func.func @transform_0(%arg0: i32) -> (i32, i32) {
    %c0_i32 = arith.constant 0 : i32
    %c0_i32_0 = arith.constant 0 : i32
    return %arg0, %c0_i32 : i32, i32
  }
  func.func @transform_1(%arg0: i32) -> (i32, i32) {
    %c0_i32 = arith.constant 0 : i32
    %c0_i32_0 = arith.constant 0 : i32
    %c0_i32_1 = arith.constant 0 : i32
    return %c0_i32, %c0_i32_0 : i32, i32
  }
  func.func @transform_2(%arg0: i32) -> (i32, i32) {
    %c0_i32 = arith.constant 0 : i32
    %c0_i32_0 = arith.constant 0 : i32
    %c0_i32_1 = arith.constant 0 : i32
    return %c0_i32, %c0_i32_0 : i32, i32
  }
  func.func @transform_3(%arg0: i32) -> (i32, i32) {
    %c0_i32 = arith.constant 0 : i32
    %c0_i32_0 = arith.constant 0 : i32
    return %arg0, %c0_i32 : i32, i32
  }
}

</mosaic_0001>

<llo_original>
// kernel: dqn_forward.4
$region0: #{dqn_forward.4}
  #allocation0 [shape = 'u32[]', space=smem, size = 0x4, offset = 0x4, fixed_abs, tag = 'smem constant byte address 0x4 - core index']
  #allocation1 [shape = 'u32[144,128]{1,0:T(1,128)}', space=vmem, size = 0x12000, scoped, tag = 'internal scratch']
  %s0 = inlined_call_operand.vmem [shape: bf16[128,256], index: 0, kind: input, shape index: {}]
  %s1 = inlined_call_operand.vmem [shape: bf16[256,32], index: 1, kind: input, shape index: {}]
  %s2 = inlined_call_operand.vmem [shape: f32[1,32], index: 2, kind: input, shape index: {}]
  %s3 = inlined_call_operand.vmem [shape: bf16[128,32], index: 3, kind: output, shape index: {}]
  %s4 = sld [smem:[#allocation0]]
  $region22: #{dqn_forward.4} parent=0
    _
  %s6 = ssub.s32 1, %s4
  %s7 = scalar_select 0, %s6, %s4
  // Predicated region
  $region2: #{dqn_forward.4} parent=0 // pred_check
    _
  $region3: #{dqn_forward.4} parent=0 // pred_check_branch
    %9 = sbr.rel (0) target = $region5
  $region4: #{dqn_forward.4} parent=0 // pred_region
    _
  $region5: #{dqn_forward.4} parent=0 // pred_fallthru
    _
  // Predicated region
  $region6: #{dqn_forward.4} parent=0 // pred_check
    _
  $region7: #{dqn_forward.4} parent=0 // pred_check_branch
    %11 = sbr.rel (0) target = $region9
  $region8: #{dqn_forward.4} parent=0 // pred_region
    _
  $region9: #{dqn_forward.4} parent=0 // pred_fallthru
    _
  // Predicated region
  $region10: #{dqn_forward.4} parent=0 // pred_check
    _
  $region11: #{dqn_forward.4} parent=0 // pred_check_branch
    %13 = sbr.rel (0) target = $region13
  $region12: #{dqn_forward.4} parent=0 // pred_region
    _
  $region13: #{dqn_forward.4} parent=0 // pred_fallthru
    _
  %v15 = vld [vmem:[%s0] sm:$0xff]
  %v16 = vld [vmem:[%s0 + $0x8] sm:$0xff]
  %v17 = vld [vmem:[%s0 + $0x10] sm:$0xff]
  %v18 = vld [vmem:[%s0 + $0x18] sm:$0xff]
  %v19 = vld [vmem:[%s0 + $0x20] sm:$0xff]
  %v20 = vld [vmem:[%s0 + $0x28] sm:$0xff]
  %v21 = vld [vmem:[%s0 + $0x30] sm:$0xff]
  %v22 = vld [vmem:[%s0 + $0x38] sm:$0xff]
  %v23 = vld [vmem:[%s0 + $0x40] sm:$0xff]
  %v24 = vld [vmem:[%s0 + $0x48] sm:$0xff]
  %v25 = vld [vmem:[%s0 + $0x50] sm:$0xff]
  %v26 = vld [vmem:[%s0 + $0x58] sm:$0xff]
  %v27 = vld [vmem:[%s0 + $0x60] sm:$0xff]
  %v28 = vld [vmem:[%s0 + $0x68] sm:$0xff]
  %v29 = vld [vmem:[%s0 + $0x70] sm:$0xff]
  %v30 = vld [vmem:[%s0 + $0x78] sm:$0xff]
  %v31 = vld [vmem:[%s1] sm:$0xf]
  %v32 = vld [vmem:[%s1 + $0x4] sm:$0xf]
  %v33 = vld [vmem:[%s1 + $0x8] sm:$0xf]
  %v34 = vld [vmem:[%s1 + $0xc] sm:$0xf]
  %v35 = vld [vmem:[%s1 + $0x10] sm:$0xf]
  %v36 = vld [vmem:[%s1 + $0x14] sm:$0xf]
  %v37 = vld [vmem:[%s1 + $0x18] sm:$0xf]
  %v38 = vld [vmem:[%s1 + $0x1c] sm:$0xf]
  %v39 = vld [vmem:[%s1 + $0x20] sm:$0xf]
  %v40 = vld [vmem:[%s1 + $0x24] sm:$0xf]
  %v41 = vld [vmem:[%s1 + $0x28] sm:$0xf]
  %v42 = vld [vmem:[%s1 + $0x2c] sm:$0xf]
  %v43 = vld [vmem:[%s1 + $0x30] sm:$0xf]
  %v44 = vld [vmem:[%s1 + $0x34] sm:$0xf]
  %v45 = vld [vmem:[%s1 + $0x38] sm:$0xf]
  %v46 = vld [vmem:[%s1 + $0x3c] sm:$0xf]
  %v47 = vld [vmem:[%s1 + $0x40] sm:$0xf]
  %v48 = vld [vmem:[%s1 + $0x44] sm:$0xf]
  %v49 = vld [vmem:[%s1 + $0x48] sm:$0xf]
  %v50 = vld [vmem:[%s1 + $0x4c] sm:$0xf]
  %v51 = vld [vmem:[%s1 + $0x50] sm:$0xf]
  %v52 = vld [vmem:[%s1 + $0x54] sm:$0xf]
  %v53 = vld [vmem:[%s1 + $0x58] sm:$0xf]
  %v54 = vld [vmem:[%s1 + $0x5c] sm:$0xf]
  %v55 = vld [vmem:[%s1 + $0x60] sm:$0xf]
  %v56 = vld [vmem:[%s1 + $0x64] sm:$0xf]
  %v57 = vld [vmem:[%s1 + $0x68] sm:$0xf]
  %v58 = vld [vmem:[%s1 + $0x6c] sm:$0xf]
  %v59 = vld [vmem:[%s1 + $0x70] sm:$0xf]
  %v60 = vld [vmem:[%s1 + $0x74] sm:$0xf]
  %v61 = vld [vmem:[%s1 + $0x78] sm:$0xf]
  %v62 = vld [vmem:[%s1 + $0x7c] sm:$0xf]
  %v63 = vld [vmem:[%s2] sm:$0x1]
  %v65 = vlaneseq
  %v66 = vshrl.u32 %v65, 7
  %v67 = vsub.s32 0, %v66
  %v68 = vrot.slane %v63, %v67
  %v86 = vunpack.c.l.b16 %v15
  %v87 = vunpack.c.h.b16 %v15
  %v88 = vunpack.c.l.b16 %v16
  %v89 = vunpack.c.h.b16 %v16
  %v90 = vunpack.c.l.b16 %v17
  %v91 = vunpack.c.h.b16 %v17
  %v92 = vunpack.c.l.b16 %v18
  %v93 = vunpack.c.h.b16 %v18
  %v94 = vunpack.c.l.b16 %v19
  %v95 = vunpack.c.h.b16 %v19
  %v96 = vunpack.c.l.b16 %v20
  %v97 = vunpack.c.h.b16 %v20
  %v98 = vunpack.c.l.b16 %v21
  %v99 = vunpack.c.h.b16 %v21
  %v100 = vunpack.c.l.b16 %v22
  %v101 = vunpack.c.h.b16 %v22
  %v102 = vunpack.c.l.b16 %v23
  %v103 = vunpack.c.h.b16 %v23
  %v104 = vunpack.c.l.b16 %v24
  %v105 = vunpack.c.h.b16 %v24
  %v106 = vunpack.c.l.b16 %v25
  %v107 = vunpack.c.h.b16 %v25
  %v108 = vunpack.c.l.b16 %v26
  %v109 = vunpack.c.h.b16 %v26
  %v110 = vunpack.c.l.b16 %v27
  %v111 = vunpack.c.h.b16 %v27
  %v112 = vunpack.c.l.b16 %v28
  %v113 = vunpack.c.h.b16 %v28
  %v114 = vunpack.c.l.b16 %v29
  %v115 = vunpack.c.h.b16 %v29
  %v116 = vunpack.c.l.b16 %v30
  %v117 = vunpack.c.h.b16 %v30
  %v118 = vpack.c.b16 %v88, %v86
  %v119 = vpack.c.b16 %v89, %v87
  %v120 = vpack.c.b16 %v92, %v90
  %v121 = vpack.c.b16 %v93, %v91
  %v122 = vpack.c.b16 %v96, %v94
  %v123 = vpack.c.b16 %v97, %v95
  %v124 = vpack.c.b16 %v100, %v98
  %v125 = vpack.c.b16 %v101, %v99
  %v126 = vpack.c.b16 %v104, %v102
  %v127 = vpack.c.b16 %v105, %v103
  %v128 = vpack.c.b16 %v108, %v106
  %v129 = vpack.c.b16 %v109, %v107
  %v130 = vpack.c.b16 %v112, %v110
  %v131 = vpack.c.b16 %v113, %v111
  %v132 = vpack.c.b16 %v116, %v114
  %v133 = vpack.c.b16 %v117, %v115
  %v182 = vunpack.c.l.b16 %v31
  %v183 = vunpack.c.l.b16 %v32
  %v184 = vunpack.c.l.b16 %v33
  %v185 = vunpack.c.l.b16 %v34
  %v186 = vunpack.c.l.b16 %v35
  %v187 = vunpack.c.l.b16 %v36
  %v188 = vunpack.c.l.b16 %v37
  %v189 = vunpack.c.l.b16 %v38
  %v190 = vunpack.c.l.b16 %v39
  %v191 = vunpack.c.l.b16 %v40
  %v192 = vunpack.c.l.b16 %v41
  %v193 = vunpack.c.l.b16 %v42
  %v194 = vunpack.c.l.b16 %v43
  %v195 = vunpack.c.l.b16 %v44
  %v196 = vunpack.c.l.b16 %v45
  %v197 = vunpack.c.l.b16 %v46
  %v198 = vunpack.c.l.b16 %v47
  %v199 = vunpack.c.l.b16 %v48
  %v200 = vunpack.c.l.b16 %v49
  %v201 = vunpack.c.l.b16 %v50
  %v202 = vunpack.c.l.b16 %v51
  %v203 = vunpack.c.l.b16 %v52
  %v204 = vunpack.c.l.b16 %v53
  %v205 = vunpack.c.l.b16 %v54
  %v206 = vunpack.c.l.b16 %v55
  %v207 = vunpack.c.l.b16 %v56
  %v208 = vunpack.c.l.b16 %v57
  %v209 = vunpack.c.l.b16 %v58
  %v210 = vunpack.c.l.b16 %v59
  %v211 = vunpack.c.l.b16 %v60
  %v212 = vunpack.c.l.b16 %v61
  %v213 = vunpack.c.l.b16 %v62
  %v214 = vpack.c.b16 %v183, %v182
  %v215 = vpack.c.b16 %v185, %v184
  %v216 = vpack.c.b16 %v187, %v186
  %v217 = vpack.c.b16 %v189, %v188
  %v218 = vpack.c.b16 %v191, %v190
  %v219 = vpack.c.b16 %v193, %v192
  %v220 = vpack.c.b16 %v195, %v194
  %v221 = vpack.c.b16 %v197, %v196
  %v222 = vpack.c.b16 %v199, %v198
  %v223 = vpack.c.b16 %v201, %v200
  %v224 = vpack.c.b16 %v203, %v202
  %v225 = vpack.c.b16 %v205, %v204
  %v226 = vpack.c.b16 %v207, %v206
  %v227 = vpack.c.b16 %v209, %v208
  %v228 = vpack.c.b16 %v211, %v210
  %v229 = vpack.c.b16 %v213, %v212
  %246 = vmatprep.subr.bf16.mxu0 0
  %247 = vmatpush1.bf16.msra.mxu0 %v214
  %248 = vmatprep.subr.bf16.mxu0 0
  %249 = vmatpush1.bf16.msra.mxu0 %v215
  %250 = vmatprep.subr.bf16.mxu0 0
  %251 = vmatpush1.bf16.msra.mxu0 %v216
  %252 = vmatprep.subr.bf16.mxu0 0
  %253 = vmatpush1.bf16.msra.mxu0 %v217
  %254 = vmatprep.subr.bf16.mxu0 0
  %255 = vmatpush1.bf16.msra.mxu0 %v218
  %256 = vmatprep.subr.bf16.mxu0 0
  %257 = vmatpush1.bf16.msra.mxu0 %v219
  %258 = vmatprep.subr.bf16.mxu0 0
  %259 = vmatpush1.bf16.msra.mxu0 %v220
  %260 = vmatprep.subr.bf16.mxu0 0
  %261 = vmatpush1.bf16.msra.mxu0 %v221
  %262 = vmatprep.subr.bf16.mxu0 0
  %263 = vmatpush1.bf16.msra.mxu0 %v222
  %264 = vmatprep.subr.bf16.mxu0 0
  %265 = vmatpush1.bf16.msra.mxu0 %v223
  %266 = vmatprep.subr.bf16.mxu0 0
  %267 = vmatpush1.bf16.msra.mxu0 %v224
  %268 = vmatprep.subr.bf16.mxu0 0
  %269 = vmatpush1.bf16.msra.mxu0 %v225
  %270 = vmatprep.subr.bf16.mxu0 0
  %271 = vmatpush1.bf16.msra.mxu0 %v226
  %272 = vmatprep.subr.bf16.mxu0 0
  %273 = vmatpush1.bf16.msra.mxu0 %v227
  %274 = vmatprep.subr.bf16.mxu0 0
  %275 = vmatpush1.bf16.msra.mxu0 %v228
  %276 = vmatprep.subr.bf16.mxu0 0
  %277 = vmatpush1.bf16.msra.mxu0 %v229
  %278 = vmatprep.mubr.bf16.mxu0 %v119
  %279 = vmatmul.mubr.bf16.gmra.mrb[0].mxu0 %v118
  %v280 = vpop.f32.mrb[0].mxu0
  %v281 = vadd.f32 %v68, %v280
  %v282 = vpop.f32.mrb[0].mxu0
  %v283 = vpop.f32.mrb[0].mxu0
  %v284 = vadd.f32 %v68, %v283
  %v285 = vpop.f32.mrb[0].mxu0
  %286 = vmatprep.mubr.bf16.mxu0 %v121
  %287 = vmatmul.mubr.bf16.gmra.mrb[0].mxu0 %v120
  %v288 = vpop.f32.mrb[0].mxu0
  %v289 = vadd.f32 %v68, %v288
  %v290 = vpop.f32.mrb[0].mxu0
  %v291 = vpop.f32.mrb[0].mxu0
  %v292 = vadd.f32 %v68, %v291
  %v293 = vpop.f32.mrb[0].mxu0
  %294 = vmatprep.mubr.bf16.mxu0 %v123
  %295 = vmatmul.mubr.bf16.gmra.mrb[0].mxu0 %v122
  %v296 = vpop.f32.mrb[0].mxu0
  %v297 = vadd.f32 %v68, %v296
  %v298 = vpop.f32.mrb[0].mxu0
  %v299 = vpop.f32.mrb[0].mxu0
  %v300 = vadd.f32 %v68, %v299
  %v301 = vpop.f32.mrb[0].mxu0
  %302 = vmatprep.mubr.bf16.mxu0 %v125
  %303 = vmatmul.mubr.bf16.gmra.mrb[0].mxu0 %v124
  %v304 = vpop.f32.mrb[0].mxu0
  %v305 = vadd.f32 %v68, %v304
  %v306 = vpop.f32.mrb[0].mxu0
  %v307 = vpop.f32.mrb[0].mxu0
  %v308 = vadd.f32 %v68, %v307
  %v309 = vpop.f32.mrb[0].mxu0
  %310 = vmatprep.mubr.bf16.mxu0 %v127
  %311 = vmatmul.mubr.bf16.gmra.mrb[0].mxu0 %v126
  %v312 = vpop.f32.mrb[0].mxu0
  %v313 = vadd.f32 %v68, %v312
  %v314 = vpop.f32.mrb[0].mxu0
  %v315 = vpop.f32.mrb[0].mxu0
  %v316 = vadd.f32 %v68, %v315
  %v317 = vpop.f32.mrb[0].mxu0
  %318 = vmatprep.mubr.bf16.mxu0 %v129
  %319 = vmatmul.mubr.bf16.gmra.mrb[0].mxu0 %v128
  %v320 = vpop.f32.mrb[0].mxu0
  %v321 = vadd.f32 %v68, %v320
  %v322 = vpop.f32.mrb[0].mxu0
  %v323 = vpop.f32.mrb[0].mxu0
  %v324 = vadd.f32 %v68, %v323
  %v325 = vpop.f32.mrb[0].mxu0
  %326 = vmatprep.mubr.bf16.mxu0 %v131
  %327 = vmatmul.mubr.bf16.gmra.mrb[0].mxu0 %v130
  %v328 = vpop.f32.mrb[0].mxu0
  %v329 = vadd.f32 %v68, %v328
  %v330 = vpop.f32.mrb[0].mxu0
  %v331 = vpop.f32.mrb[0].mxu0
  %v332 = vadd.f32 %v68, %v331
  %v333 = vpop.f32.mrb[0].mxu0
  %334 = vmatprep.mubr.bf16.mxu0 %v133
  %335 = vmatmul.mubr.bf16.gmra.mrb[0].mxu0 %v132
  %v336 = vpop.f32.mrb[0].mxu0
  %v337 = vadd.f32 %v68, %v336
  %v338 = vpop.f32.mrb[0].mxu0
  %v339 = vpop.f32.mrb[0].mxu0
  %v340 = vadd.f32 %v68, %v339
  %v341 = vpop.f32.mrb[0].mxu0
  %342 = vdwg.mxu0
  %v343 = vmax.f32 %v281, 0.0
  %v344 = vmax.f32 %v284, 0.0
  %v345 = vmax.f32 %v289, 0.0
  %v346 = vmax.f32 %v292, 0.0
  %v347 = vmax.f32 %v297, 0.0
  %v348 = vmax.f32 %v300, 0.0
  %v349 = vmax.f32 %v305, 0.0
  %v350 = vmax.f32 %v308, 0.0
  %v351 = vmax.f32 %v313, 0.0
  %v352 = vmax.f32 %v316, 0.0
  %v353 = vmax.f32 %v321, 0.0
  %v354 = vmax.f32 %v324, 0.0
  %v355 = vmax.f32 %v329, 0.0
  %v356 = vmax.f32 %v332, 0.0
  %v357 = vmax.f32 %v337, 0.0
  %v358 = vmax.f32 %v340, 0.0
  %v359 = vpack.c.bf16 %v344, %v343
  %v360 = vpack.c.bf16 %v346, %v345
  %v361 = vpack.c.bf16 %v348, %v347
  %v362 = vpack.c.bf16 %v350, %v349
  %v363 = vpack.c.bf16 %v352, %v351
  %v364 = vpack.c.bf16 %v354, %v353
  %v365 = vpack.c.bf16 %v356, %v355
  %v366 = vpack.c.bf16 %v358, %v357
  %v375 = vunpack.c.l.b16 %v359
  %v376 = vunpack.c.h.b16 %v359
  %v377 = vunpack.c.l.b16 %v360
  %v378 = vunpack.c.h.b16 %v360
  %v379 = vunpack.c.l.b16 %v361
  %v380 = vunpack.c.h.b16 %v361
  %v381 = vunpack.c.l.b16 %v362
  %v382 = vunpack.c.h.b16 %v362
  %v383 = vunpack.c.l.b16 %v363
  %v384 = vunpack.c.h.b16 %v363
  %v385 = vunpack.c.l.b16 %v364
  %v386 = vunpack.c.h.b16 %v364
  %v387 = vunpack.c.l.b16 %v365
  %v388 = vunpack.c.h.b16 %v365
  %v389 = vunpack.c.l.b16 %v366
  %v390 = vunpack.c.h.b16 %v366
  %v391 = vpack.c.b16 %v375, %v375
  %v392 = vpack.c.b16 %v376, %v376
  %v393 = vpack.c.b16 %v377, %v377
  %v394 = vpack.c.b16 %v378, %v378
  %v395 = vpack.c.b16 %v379, %v379
  %v396 = vpack.c.b16 %v380, %v380
  %v397 = vpack.c.b16 %v381, %v381
  %v398 = vpack.c.b16 %v382, %v382
  %v399 = vpack.c.b16 %v383, %v383
  %v400 = vpack.c.b16 %v384, %v384
  %v401 = vpack.c.b16 %v385, %v385
  %v402 = vpack.c.b16 %v386, %v386
  %v403 = vpack.c.b16 %v387, %v387
  %v404 = vpack.c.b16 %v388, %v388
  %v405 = vpack.c.b16 %v389, %v389
  %v406 = vpack.c.b16 %v390, %v390
  %vm423 = vcmask 257024
  %424 = vst.msk [vmem:[%s3] sm:$0xf] %vm423, %v391
  %425 = vst.msk [vmem:[%s3 + $0x4] sm:$0xf] %vm423, %v392
  %426 = vst.msk [vmem:[%s3 + $0x8] sm:$0xf] %vm423, %v393
  %427 = vst.msk [vmem:[%s3 + $0xc] sm:$0xf] %vm423, %v394
  %428 = vst.msk [vmem:[%s3 + $0x10] sm:$0xf] %vm423, %v395
  %429 = vst.msk [vmem:[%s3 + $0x14] sm:$0xf] %vm423, %v396
  %430 = vst.msk [vmem:[%s3 + $0x18] sm:$0xf] %vm423, %v397
  %431 = vst.msk [vmem:[%s3 + $0x1c] sm:$0xf] %vm423, %v398
  %432 = vst.msk [vmem:[%s3 + $0x20] sm:$0xf] %vm423, %v399
  %433 = vst.msk [vmem:[%s3 + $0x24] sm:$0xf] %vm423, %v400
  %434 = vst.msk [vmem:[%s3 + $0x28] sm:$0xf] %vm423, %v401
  %435 = vst.msk [vmem:[%s3 + $0x2c] sm:$0xf] %vm423, %v402
  %436 = vst.msk [vmem:[%s3 + $0x30] sm:$0xf] %vm423, %v403
  %437 = vst.msk [vmem:[%s3 + $0x34] sm:$0xf] %vm423, %v404
  %438 = vst.msk [vmem:[%s3 + $0x38] sm:$0xf] %vm423, %v405
  %439 = vst.msk [vmem:[%s3 + $0x3c] sm:$0xf] %vm423, %v406
  // Predicated region
  $region14: #{dqn_forward.4} parent=0 // pred_check
    _
  $region15: #{dqn_forward.4} parent=0 // pred_check_branch
    %441 = sbr.rel (0) target = $region17
  $region16: #{dqn_forward.4} parent=0 // pred_region
    _
  $region17: #{dqn_forward.4} parent=0 // pred_fallthru
    _
  // Predicated region
  $region18: #{dqn_forward.4} parent=0 // pred_check
    _
  $region19: #{dqn_forward.4} parent=0 // pred_check_branch
    %443 = sbr.rel (0) target = $region21
  $region20: #{dqn_forward.4} parent=0 // pred_region
    _
  $region21: #{dqn_forward.4} parent=0 // pred_fallthru
    _

// kernel: dqn_forward.5
$region0: #{dqn_forward.5}
  #allocation0 [shape = 'u32[]', space=smem, size = 0x4, offset = 0x4, fixed_abs, tag = 'smem constant byte address 0x4 - core index']
  #allocation1 [shape = 'u32[144,128]{1,0:T(1,128)}', space=vmem, size = 0x12000, scoped, tag = 'internal scratch']
  %s0 = inlined_call_operand.vmem [shape: bf16[24,512], index: 0, kind: input, shape index: {}]
  %s1 = inlined_call_operand.vmem [shape: bf16[512,64], index: 1, kind: input, shape index: {}]
  %s2 = inlined_call_operand.vmem [shape: f32[1,64], index: 2, kind: input, shape index: {}]
  %s3 = inlined_call_operand.vmem [shape: bf16[24,64], index: 3, kind: output, shape index: {}]
  %s4 = sld [smem:[#allocation0]]
  $region22: #{dqn_forward.5} parent=0
    _
  %s6 = ssub.s32 1, %s4
  %s7 = scalar_select 0, %s6, %s4
  // Predicated region
  $region2: #{dqn_forward.5} parent=0 // pred_check
    _
  $region3: #{dqn_forward.5} parent=0 // pred_check_branch
    %9 = sbr.rel (0) target = $region5
  $region4: #{dqn_forward.5} parent=0 // pred_region
    _
  $region5: #{dqn_forward.5} parent=0 // pred_fallthru
    _
  // Predicated region
  $region6: #{dqn_forward.5} parent=0 // pred_check
    _
  $region7: #{dqn_forward.5} parent=0 // pred_check_branch
    %11 = sbr.rel (0) target = $region9
  $region8: #{dqn_forward.5} parent=0 // pred_region
    _
  $region9: #{dqn_forward.5} parent=0 // pred_fallthru
    _
  // Predicated region
  $region10: #{dqn_forward.5} parent=0 // pred_check
    _
  $region11: #{dqn_forward.5} parent=0 // pred_check_branch
    %13 = sbr.rel (0) target = $region13
  $region12: #{dqn_forward.5} parent=0 // pred_region
    _
  $region13: #{dqn_forward.5} parent=0 // pred_fallthru
    _
  %v15 = vld [vmem:[%s0] sm:$0xff]
  %v16 = vld [vmem:[%s0 + $0x8] sm:$0xff]
  %v17 = vld [vmem:[%s0 + $0x10] sm:$0xff]
  %v18 = vld [vmem:[%s0 + $0x18] sm:$0xff]
  %v19 = vld [vmem:[%s0 + $0x20] sm:$0xff]
  %v20 = vld [vmem:[%s0 + $0x28] sm:$0xff]
  %v21 = vld [vmem:[%s1] sm:$0xf]
  %v22 = vld [vmem:[%s1 + $0x4] sm:$0xf]
  %v23 = vld [vmem:[%s1 + $0x8] sm:$0xf]
  %v24 = vld [vmem:[%s1 + $0xc] sm:$0xf]
  %v25 = vld [vmem:[%s1 + $0x10] sm:$0xf]
  %v26 = vld [vmem:[%s1 + $0x14] sm:$0xf]
  %v27 = vld [vmem:[%s1 + $0x18] sm:$0xf]
  %v28 = vld [vmem:[%s1 + $0x1c] sm:$0xf]
  %v29 = vld [vmem:[%s1 + $0x20] sm:$0xf]
  %v30 = vld [vmem:[%s1 + $0x24] sm:$0xf]
  %v31 = vld [vmem:[%s1 + $0x28] sm:$0xf]
  %v32 = vld [vmem:[%s1 + $0x2c] sm:$0xf]
  %v33 = vld [vmem:[%s1 + $0x30] sm:$0xf]
  %v34 = vld [vmem:[%s1 + $0x34] sm:$0xf]
  %v35 = vld [vmem:[%s1 + $0x38] sm:$0xf]
  %v36 = vld [vmem:[%s1 + $0x3c] sm:$0xf]
  %v37 = vld [vmem:[%s1 + $0x40] sm:$0xf]
  %v38 = vld [vmem:[%s1 + $0x44] sm:$0xf]
  %v39 = vld [vmem:[%s1 + $0x48] sm:$0xf]
  %v40 = vld [vmem:[%s1 + $0x4c] sm:$0xf]
  %v41 = vld [vmem:[%s1 + $0x50] sm:$0xf]
  %v42 = vld [vmem:[%s1 + $0x54] sm:$0xf]
  %v43 = vld [vmem:[%s1 + $0x58] sm:$0xf]
  %v44 = vld [vmem:[%s1 + $0x5c] sm:$0xf]
  %v45 = vld [vmem:[%s1 + $0x60] sm:$0xf]
  %v46 = vld [vmem:[%s1 + $0x64] sm:$0xf]
  %v47 = vld [vmem:[%s1 + $0x68] sm:$0xf]
  %v48 = vld [vmem:[%s1 + $0x6c] sm:$0xf]
  %v49 = vld [vmem:[%s1 + $0x70] sm:$0xf]
  %v50 = vld [vmem:[%s1 + $0x74] sm:$0xf]
  %v51 = vld [vmem:[%s1 + $0x78] sm:$0xf]
  %v52 = vld [vmem:[%s1 + $0x7c] sm:$0xf]
  %v53 = vld [vmem:[%s1 + $0x80] sm:$0xf]
  %v54 = vld [vmem:[%s1 + $0x84] sm:$0xf]
  %v55 = vld [vmem:[%s1 + $0x88] sm:$0xf]
  %v56 = vld [vmem:[%s1 + $0x8c] sm:$0xf]
  %v57 = vld [vmem:[%s1 + $0x90] sm:$0xf]
  %v58 = vld [vmem:[%s1 + $0x94] sm:$0xf]
  %v59 = vld [vmem:[%s1 + $0x98] sm:$0xf]
  %v60 = vld [vmem:[%s1 + $0x9c] sm:$0xf]
  %v61 = vld [vmem:[%s1 + $0xa0] sm:$0xf]
  %v62 = vld [vmem:[%s1 + $0xa4] sm:$0xf]
  %v63 = vld [vmem:[%s1 + $0xa8] sm:$0xf]
  %v64 = vld [vmem:[%s1 + $0xac] sm:$0xf]
  %v65 = vld [vmem:[%s1 + $0xb0] sm:$0xf]
  %v66 = vld [vmem:[%s1 + $0xb4] sm:$0xf]
  %v67 = vld [vmem:[%s1 + $0xb8] sm:$0xf]
  %v68 = vld [vmem:[%s1 + $0xbc] sm:$0xf]
  %v69 = vld [vmem:[%s1 + $0xc0] sm:$0xf]
  %v70 = vld [vmem:[%s1 + $0xc4] sm:$0xf]
  %v71 = vld [vmem:[%s1 + $0xc8] sm:$0xf]
  %v72 = vld [vmem:[%s1 + $0xcc] sm:$0xf]
  %v73 = vld [vmem:[%s1 + $0xd0] sm:$0xf]
  %v74 = vld [vmem:[%s1 + $0xd4] sm:$0xf]
  %v75 = vld [vmem:[%s1 + $0xd8] sm:$0xf]
  %v76 = vld [vmem:[%s1 + $0xdc] sm:$0xf]
  %v77 = vld [vmem:[%s1 + $0xe0] sm:$0xf]
  %v78 = vld [vmem:[%s1 + $0xe4] sm:$0xf]
  %v79 = vld [vmem:[%s1 + $0xe8] sm:$0xf]
  %v80 = vld [vmem:[%s1 + $0xec] sm:$0xf]
  %v81 = vld [vmem:[%s1 + $0xf0] sm:$0xf]
  %v82 = vld [vmem:[%s1 + $0xf4] sm:$0xf]
  %v83 = vld [vmem:[%s1 + $0xf8] sm:$0xf]
  %v84 = vld [vmem:[%s1 + $0xfc] sm:$0xf]
  %v85 = vld [vmem:[%s2] sm:$0x1]
  %v87 = vlaneseq
  %v88 = vshrl.u32 %v87, 7
  %v89 = vsub.s32 0, %v88
  %v90 = vrot.slane %v85, %v89
  %v98 = vunpack.c.l.b16 %v15
  %v99 = vunpack.c.h.b16 %v15
  %v100 = vunpack.c.l.b16 %v16
  %v101 = vunpack.c.h.b16 %v16
  %v102 = vunpack.c.l.b16 %v17
  %v103 = vunpack.c.h.b16 %v17
  %v104 = vunpack.c.l.b16 %v18
  %v105 = vunpack.c.h.b16 %v18
  %v106 = vunpack.c.l.b16 %v19
  %v107 = vunpack.c.h.b16 %v19
  %v108 = vunpack.c.l.b16 %v20
  %v109 = vunpack.c.h.b16 %v20
  %v110 = vpack.c.b16 %v102, %v98
  %v111 = vpack.c.b16 %v103, %v99
  %v112 = vpack.c.b16 %v104, %v100
  %v113 = vpack.c.b16 %v105, %v101
  %v114 = vpack.c.b16 %v106, %v106
  %v115 = vpack.c.b16 %v107, %v107
  %v116 = vpack.c.b16 %v108, %v108
  %v117 = vpack.c.b16 %v109, %v109
  %v190 = vunpack.c.l.b16 %v21
  %v191 = vunpack.c.l.b16 %v22
  %v192 = vunpack.c.l.b16 %v23
  %v193 = vunpack.c.l.b16 %v24
  %v194 = vunpack.c.l.b16 %v25
  %v195 = vunpack.c.l.b16 %v26
  %v196 = vunpack.c.l.b16 %v27
  %v197 = vunpack.c.l.b16 %v28
  %v198 = vunpack.c.l.b16 %v29
  %v199 = vunpack.c.l.b16 %v30
  %v200 = vunpack.c.l.b16 %v31
  %v201 = vunpack.c.l.b16 %v32
  %v202 = vunpack.c.l.b16 %v33
  %v203 = vunpack.c.l.b16 %v34
  %v204 = vunpack.c.l.b16 %v35
  %v205 = vunpack.c.l.b16 %v36
  %v206 = vunpack.c.l.b16 %v37
  %v207 = vunpack.c.l.b16 %v38
  %v208 = vunpack.c.l.b16 %v39
  %v209 = vunpack.c.l.b16 %v40
  %v210 = vunpack.c.l.b16 %v41
  %v211 = vunpack.c.l.b16 %v42
  %v212 = vunpack.c.l.b16 %v43
  %v213 = vunpack.c.l.b16 %v44
  %v214 = vunpack.c.l.b16 %v45
  %v215 = vunpack.c.l.b16 %v46
  %v216 = vunpack.c.l.b16 %v47
  %v217 = vunpack.c.l.b16 %v48
  %v218 = vunpack.c.l.b16 %v49
  %v219 = vunpack.c.l.b16 %v50
  %v220 = vunpack.c.l.b16 %v51
  %v221 = vunpack.c.l.b16 %v52
  %v222 = vunpack.c.l.b16 %v53
  %v223 = vunpack.c.l.b16 %v54
  %v224 = vunpack.c.l.b16 %v55
  %v225 = vunpack.c.l.b16 %v56
  %v226 = vunpack.c.l.b16 %v57
  %v227 = vunpack.c.l.b16 %v58
  %v228 = vunpack.c.l.b16 %v59
  %v229 = vunpack.c.l.b16 %v60
  %v230 = vunpack.c.l.b16 %v61
  %v231 = vunpack.c.l.b16 %v62
  %v232 = vunpack.c.l.b16 %v63
  %v233 = vunpack.c.l.b16 %v64
  %v234 = vunpack.c.l.b16 %v65
  %v235 = vunpack.c.l.b16 %v66
  %v236 = vunpack.c.l.b16 %v67
  %v237 = vunpack.c.l.b16 %v68
  %v238 = vunpack.c.l.b16 %v69
  %v239 = vunpack.c.l.b16 %v70
  %v240 = vunpack.c.l.b16 %v71
  %v241 = vunpack.c.l.b16 %v72
  %v242 = vunpack.c.l.b16 %v73
  %v243 = vunpack.c.l.b16 %v74
  %v244 = vunpack.c.l.b16 %v75
  %v245 = vunpack.c.l.b16 %v76
  %v246 = vunpack.c.l.b16 %v77
  %v247 = vunpack.c.l.b16 %v78
  %v248 = vunpack.c.l.b16 %v79
  %v249 = vunpack.c.l.b16 %v80
  %v250 = vunpack.c.l.b16 %v81
  %v251 = vunpack.c.l.b16 %v82
  %v252 = vunpack.c.l.b16 %v83
  %v253 = vunpack.c.l.b16 %v84
  %v254 = vpack.c.b16 %v191, %v190
  %v255 = vpack.c.b16 %v193, %v192
  %v256 = vpack.c.b16 %v195, %v194
  %v257 = vpack.c.b16 %v197, %v196
  %v258 = vpack.c.b16 %v199, %v198
  %v259 = vpack.c.b16 %v201, %v200
  %v260 = vpack.c.b16 %v203, %v202
  %v261 = vpack.c.b16 %v205, %v204
  %v262 = vpack.c.b16 %v207, %v206
  %v263 = vpack.c.b16 %v209, %v208
  %v264 = vpack.c.b16 %v211, %v210
  %v265 = vpack.c.b16 %v213, %v212
  %v266 = vpack.c.b16 %v215, %v214
  %v267 = vpack.c.b16 %v217, %v216
  %v268 = vpack.c.b16 %v219, %v218
  %v269 = vpack.c.b16 %v221, %v220
  %v270 = vpack.c.b16 %v223, %v222
  %v271 = vpack.c.b16 %v225, %v224
  %v272 = vpack.c.b16 %v227, %v226
  %v273 = vpack.c.b16 %v229, %v228
  %v274 = vpack.c.b16 %v231, %v230
  %v275 = vpack.c.b16 %v233, %v232
  %v276 = vpack.c.b16 %v235, %v234
  %v277 = vpack.c.b16 %v237, %v236
  %v278 = vpack.c.b16 %v239, %v238
  %v279 = vpack.c.b16 %v241, %v240
  %v280 = vpack.c.b16 %v243, %v242
  %v281 = vpack.c.b16 %v245, %v244
  %v282 = vpack.c.b16 %v247, %v246
  %v283 = vpack.c.b16 %v249, %v248
  %v284 = vpack.c.b16 %v251, %v250
  %v285 = vpack.c.b16 %v253, %v252
  %318 = vmatprep.subr.bf16.mxu0 0
  %319 = vmatpush1.bf16.msra.mxu0 %v254
  %320 = vmatprep.subr.bf16.mxu0 0
  %321 = vmatpush1.bf16.msra.mxu0 %v255
  %322 = vmatprep.subr.bf16.mxu0 0
  %323 = vmatpush1.bf16.msra.mxu0 %v256
  %324 = vmatprep.subr.bf16.mxu0 0
  %325 = vmatpush1.bf16.msra.mxu0 %v257
  %326 = vmatprep.subr.bf16.mxu0 0
  %327 = vmatpush1.bf16.msra.mxu0 %v258
  %328 = vmatprep.subr.bf16.mxu0 0
  %329 = vmatpush1.bf16.msra.mxu0 %v259
  %330 = vmatprep.subr.bf16.mxu0 0
  %331 = vmatpush1.bf16.msra.mxu0 %v260
  %332 = vmatprep.subr.bf16.mxu0 0
  %333 = vmatpush1.bf16.msra.mxu0 %v261
  %334 = vmatprep.subr.bf16.mxu0 0
  %335 = vmatpush1.bf16.msra.mxu0 %v262
  %336 = vmatprep.subr.bf16.mxu0 0
  %337 = vmatpush1.bf16.msra.mxu0 %v263
  %338 = vmatprep.subr.bf16.mxu0 0
  %339 = vmatpush1.bf16.msra.mxu0 %v264
  %340 = vmatprep.subr.bf16.mxu0 0
  %341 = vmatpush1.bf16.msra.mxu0 %v265
  %342 = vmatprep.subr.bf16.mxu0 0
  %343 = vmatpush1.bf16.msra.mxu0 %v266
  %344 = vmatprep.subr.bf16.mxu0 0
  %345 = vmatpush1.bf16.msra.mxu0 %v267
  %346 = vmatprep.subr.bf16.mxu0 0
  %347 = vmatpush1.bf16.msra.mxu0 %v268
  %348 = vmatprep.subr.bf16.mxu0 0
  %349 = vmatpush1.bf16.msra.mxu0 %v269
  %350 = vmatprep.mubr.bf16.mxu0 %v111
  %351 = vmatmul.mubr.bf16.gmra.mrb[0].mxu0 %v110
  %v352 = vpop.f32.mrb[0].mxu0
  %v353 = vadd.f32 %v90, %v352
  %v354 = vpop.f32.mrb[0].mxu0
  %v355 = vpop.f32.mrb[0].mxu0
  %v356 = vadd.f32 %v90, %v355
  %v357 = vpop.f32.mrb[0].mxu0
  %358 = vmatprep.mubr.bf16.mxu0 %v115
  %359 = vmatmul.mubr.bf16.gmra.mrb[0].mxu0 %v114
  %v360 = vpop.f32.mrb[0].mxu0
  %v361 = vadd.f32 %v90, %v360
  %v362 = vpop.f32.mrb[0].mxu0
  %v363 = vpop.f32.mrb[0].mxu0
  %v364 = vpop.f32.mrb[0].mxu0
  %365 = vdwg.mxu0
  %366 = vmatprep.subr.bf16.mxu0 0
  %367 = vmatpush1.bf16.msra.mxu0 %v270
  %368 = vmatprep.subr.bf16.mxu0 0
  %369 = vmatpush1.bf16.msra.mxu0 %v271
  %370 = vmatprep.subr.bf16.mxu0 0
  %371 = vmatpush1.bf16.msra.mxu0 %v272
  %372 = vmatprep.subr.bf16.mxu0 0
  %373 = vmatpush1.bf16.msra.mxu0 %v273
  %374 = vmatprep.subr.bf16.mxu0 0
  %375 = vmatpush1.bf16.msra.mxu0 %v274
  %376 = vmatprep.subr.bf16.mxu0 0
  %377 = vmatpush1.bf16.msra.mxu0 %v275
  %378 = vmatprep.subr.bf16.mxu0 0
  %379 = vmatpush1.bf16.msra.mxu0 %v276
  %380 = vmatprep.subr.bf16.mxu0 0
  %381 = vmatpush1.bf16.msra.mxu0 %v277
  %382 = vmatprep.subr.bf16.mxu0 0
  %383 = vmatpush1.bf16.msra.mxu0 %v278
  %384 = vmatprep.subr.bf16.mxu0 0
  %385 = vmatpush1.bf16.msra.mxu0 %v279
  %386 = vmatprep.subr.bf16.mxu0 0
  %387 = vmatpush1.bf16.msra.mxu0 %v280
  %388 = vmatprep.subr.bf16.mxu0 0
  %389 = vmatpush1.bf16.msra.mxu0 %v281
  %390 = vmatprep.subr.bf16.mxu0 0
  %391 = vmatpush1.bf16.msra.mxu0 %v282
  %392 = vmatprep.subr.bf16.mxu0 0
  %393 = vmatpush1.bf16.msra.mxu0 %v283
  %394 = vmatprep.subr.bf16.mxu0 0
  %395 = vmatpush1.bf16.msra.mxu0 %v284
  %396 = vmatprep.subr.bf16.mxu0 0
  %397 = vmatpush1.bf16.msra.mxu0 %v285
  %398 = vmatprep.mubr.bf16.mxu0 %v113
  %399 = vmatmul.mubr.bf16.gmra.mrb[0].mxu0 %v112
  %v400 = vpop.f32.mrb[0].mxu0
  %v401 = vadd.f32 %v353, %v400
  %v402 = vpop.f32.mrb[0].mxu0
  %v403 = vpop.f32.mrb[0].mxu0
  %v404 = vadd.f32 %v356, %v403
  %v405 = vpop.f32.mrb[0].mxu0
  %406 = vmatprep.mubr.bf16.mxu0 %v117
  %407 = vmatmul.mubr.bf16.gmra.mrb[0].mxu0 %v116
  %v408 = vpop.f32.mrb[0].mxu0
  %v409 = vadd.f32 %v361, %v408
  %v410 = vpop.f32.mrb[0].mxu0
  %v411 = vpop.f32.mrb[0].mxu0
  %v412 = vpop.f32.mrb[0].mxu0
  %413 = vdwg.mxu0
  %v414 = vmax.f32 %v401, 0.0
  %v415 = vmax.f32 %v404, 0.0
  %v416 = vmax.f32 %v409, 0.0
  %v417 = vpack.c.bf16 %v415, %v414
  %v418 = vpack.c.bf16 %v416, %v416
  %v421 = vunpack.c.l.b16 %v417
  %v422 = vunpack.c.h.b16 %v417
  %v423 = vunpack.c.l.b16 %v418
  %v424 = vpack.c.b16 %v421, %v421
  %v425 = vpack.c.b16 %v422, %v422
  %v426 = vpack.c.b16 %v423, %v423
  %vm430 = vcmask 519168
  %431 = vst.msk [vmem:[%s3] sm:$0xf] %vm430, %v424
  %432 = vst.msk [vmem:[%s3 + $0x4] sm:$0xf] %vm430, %v425
  %433 = vst.msk [vmem:[%s3 + $0x8] sm:$0xf] %vm430, %v426
  // Predicated region
  $region14: #{dqn_forward.5} parent=0 // pred_check
    _
  $region15: #{dqn_forward.5} parent=0 // pred_check_branch
    %435 = sbr.rel (0) target = $region17
  $region16: #{dqn_forward.5} parent=0 // pred_region
    _
  $region17: #{dqn_forward.5} parent=0 // pred_fallthru
    _
  // Predicated region
  $region18: #{dqn_forward.5} parent=0 // pred_check
    _
  $region19: #{dqn_forward.5} parent=0 // pred_check_branch
    %437 = sbr.rel (0) target = $region21
  $region20: #{dqn_forward.5} parent=0 // pred_region
    _
  $region21: #{dqn_forward.5} parent=0 // pred_fallthru
    _

// kernel: dqn_forward.7
$region0: #{dqn_forward.7}
  #allocation0 [shape = 'u32[]', space=smem, size = 0x4, offset = 0x4, fixed_abs, tag = 'smem constant byte address 0x4 - core index']
  #allocation1 [shape = 'u32[144,128]{1,0:T(1,128)}', space=vmem, size = 0x12000, scoped, tag = 'internal scratch']
  %s0 = inlined_call_operand.vmem [shape: bf16[8,64], index: 0, kind: input, shape index: {}]
  %s1 = inlined_call_operand.vmem [shape: bf16[64,512], index: 1, kind: input, shape index: {}]
  %s2 = inlined_call_operand.vmem [shape: f32[1,512], index: 2, kind: input, shape index: {}]
  %s3 = inlined_call_operand.vmem [shape: bf16[512,128], index: 3, kind: input, shape index: {}]
  %s4 = inlined_call_operand.vmem [shape: f32[1,128], index: 4, kind: input, shape index: {}]
  %s5 = inlined_call_operand.vmem [shape: f32[8,128], index: 5, kind: output, shape index: {}]
  %s6 = sld [smem:[#allocation0]]
  $region30: #{dqn_forward.7} parent=0
    _
  %s8 = ssub.s32 1, %s6
  %s9 = scalar_select 0, %s8, %s6
  // Predicated region
  $region2: #{dqn_forward.7} parent=0 // pred_check
    _
  $region3: #{dqn_forward.7} parent=0 // pred_check_branch
    %11 = sbr.rel (0) target = $region5
  $region4: #{dqn_forward.7} parent=0 // pred_region
    _
  $region5: #{dqn_forward.7} parent=0 // pred_fallthru
    _
  // Predicated region
  $region6: #{dqn_forward.7} parent=0 // pred_check
    _
  $region7: #{dqn_forward.7} parent=0 // pred_check_branch
    %13 = sbr.rel (0) target = $region9
  $region8: #{dqn_forward.7} parent=0 // pred_region
    _
  $region9: #{dqn_forward.7} parent=0 // pred_fallthru
    _
  // Predicated region
  $region10: #{dqn_forward.7} parent=0 // pred_check
    _
  $region11: #{dqn_forward.7} parent=0 // pred_check_branch
    %15 = sbr.rel (0) target = $region13
  $region12: #{dqn_forward.7} parent=0 // pred_region
    _
  $region13: #{dqn_forward.7} parent=0 // pred_fallthru
    _
  // Predicated region
  $region14: #{dqn_forward.7} parent=0 // pred_check
    _
  $region15: #{dqn_forward.7} parent=0 // pred_check_branch
    %17 = sbr.rel (0) target = $region17
  $region16: #{dqn_forward.7} parent=0 // pred_region
    _
  $region17: #{dqn_forward.7} parent=0 // pred_fallthru
    _
  // Predicated region
  $region18: #{dqn_forward.7} parent=0 // pred_check
    _
  $region19: #{dqn_forward.7} parent=0 // pred_check_branch
    %19 = sbr.rel (0) target = $region21
  $region20: #{dqn_forward.7} parent=0 // pred_region
    _
  $region21: #{dqn_forward.7} parent=0 // pred_fallthru
    _
  %v21 = vld [vmem:[%s0] sm:$0xf]
  %v22 = vld [vmem:[%s1] sm:$0xff]
  %v23 = vld [vmem:[%s1 + $0x8] sm:$0xff]
  %v24 = vld [vmem:[%s1 + $0x10] sm:$0xff]
  %v25 = vld [vmem:[%s1 + $0x18] sm:$0xff]
  %v26 = vld [vmem:[%s1 + $0x20] sm:$0xff]
  %v27 = vld [vmem:[%s1 + $0x28] sm:$0xff]
  %v28 = vld [vmem:[%s1 + $0x30] sm:$0xff]
  %v29 = vld [vmem:[%s1 + $0x38] sm:$0xff]
  %v30 = vld [vmem:[%s1 + $0x40] sm:$0xff]
  %v31 = vld [vmem:[%s1 + $0x48] sm:$0xff]
  %v32 = vld [vmem:[%s1 + $0x50] sm:$0xff]
  %v33 = vld [vmem:[%s1 + $0x58] sm:$0xff]
  %v34 = vld [vmem:[%s1 + $0x60] sm:$0xff]
  %v35 = vld [vmem:[%s1 + $0x68] sm:$0xff]
  %v36 = vld [vmem:[%s1 + $0x70] sm:$0xff]
  %v37 = vld [vmem:[%s1 + $0x78] sm:$0xff]
  %v38 = vld [vmem:[%s2] sm:$0xf]
  %v40 = vlaneseq
  %v41 = vshrl.u32 %v40, 7
  %v42 = vsub.s32 0, %v41
  %v43 = vrot.slane %v38, %v42
  %v44 = vlaneseq
  %v45 = vshrl.u32 %v44, 7
  %v46 = vsub.s32 1, %v45
  %v47 = vrot.slane %v38, %v46
  %v48 = vlaneseq
  %v49 = vshrl.u32 %v48, 7
  %v50 = vsub.s32 2, %v49
  %v51 = vrot.slane %v38, %v50
  %v52 = vlaneseq
  %v53 = vshrl.u32 %v52, 7
  %v54 = vsub.s32 3, %v53
  %v55 = vrot.slane %v38, %v54
  %v76 = vunpack.c.l.b16 %v22
  %v77 = vunpack.c.h.b16 %v22
  %v78 = vunpack.c.l.b16 %v23
  %v79 = vunpack.c.h.b16 %v23
  %v80 = vunpack.c.l.b16 %v24
  %v81 = vunpack.c.h.b16 %v24
  %v82 = vunpack.c.l.b16 %v25
  %v83 = vunpack.c.h.b16 %v25
  %v84 = vunpack.c.l.b16 %v26
  %v85 = vunpack.c.h.b16 %v26
  %v86 = vunpack.c.l.b16 %v27
  %v87 = vunpack.c.h.b16 %v27
  %v88 = vunpack.c.l.b16 %v28
  %v89 = vunpack.c.h.b16 %v28
  %v90 = vunpack.c.l.b16 %v29
  %v91 = vunpack.c.h.b16 %v29
  %v92 = vunpack.c.l.b16 %v30
  %v93 = vunpack.c.h.b16 %v30
  %v94 = vunpack.c.l.b16 %v31
  %v95 = vunpack.c.h.b16 %v31
  %v96 = vunpack.c.l.b16 %v32
  %v97 = vunpack.c.h.b16 %v32
  %v98 = vunpack.c.l.b16 %v33
  %v99 = vunpack.c.h.b16 %v33
  %v100 = vunpack.c.l.b16 %v34
  %v101 = vunpack.c.h.b16 %v34
  %v102 = vunpack.c.l.b16 %v35
  %v103 = vunpack.c.h.b16 %v35
  %v104 = vunpack.c.l.b16 %v36
  %v105 = vunpack.c.h.b16 %v36
  %v106 = vunpack.c.l.b16 %v37
  %v107 = vunpack.c.h.b16 %v37
  %v108 = vpack.c.b16 %v80, %v76
  %v109 = vpack.c.b16 %v81, %v77
  %v110 = vpack.c.b16 %v82, %v78
  %v111 = vpack.c.b16 %v83, %v79
  %v112 = vpack.c.b16 %v88, %v84
  %v113 = vpack.c.b16 %v89, %v85
  %v114 = vpack.c.b16 %v90, %v86
  %v115 = vpack.c.b16 %v91, %v87
  %v116 = vpack.c.b16 %v96, %v92
  %v117 = vpack.c.b16 %v97, %v93
  %v118 = vpack.c.b16 %v98, %v94
  %v119 = vpack.c.b16 %v99, %v95
  %v120 = vpack.c.b16 %v104, %v100
  %v121 = vpack.c.b16 %v105, %v101
  %v122 = vpack.c.b16 %v106, %v102
  %v123 = vpack.c.b16 %v107, %v103
  %vm140 = vcmask 523264
  %v142 = vsel %vm140, %v21, 0
  %144 = vmatprep.subr.bf16.mxu0 %v109
  %145 = vmatpush1.bf16.msra.mxu0 %v108
  %146 = vmatprep.subr.bf16.mxu0 %v113
  %147 = vmatpush1.bf16.msra.mxu0 %v112
  %148 = vmatprep.subr.bf16.mxu0 %v117
  %149 = vmatpush1.bf16.msra.mxu0 %v116
  %150 = vmatprep.subr.bf16.mxu0 %v121
  %151 = vmatpush1.bf16.msra.mxu0 %v120
  %152 = vmatprep.subr.bf16.mxu0 0
  %153 = vmatpush1.bf16.msra.mxu0 0
  %154 = vmatprep.subr.bf16.mxu0 0
  %155 = vmatpush1.bf16.msra.mxu0 0
  %156 = vmatprep.subr.bf16.mxu0 0
  %157 = vmatpush1.bf16.msra.mxu0 0
  %158 = vmatprep.subr.bf16.mxu0 0
  %159 = vmatpush1.bf16.msra.mxu0 0
  %160 = vmatprep.subr.bf16.mxu0 0
  %161 = vmatpush1.bf16.msra.mxu0 0
  %162 = vmatprep.subr.bf16.mxu0 0
  %163 = vmatpush1.bf16.msra.mxu0 0
  %164 = vmatprep.subr.bf16.mxu0 0
  %165 = vmatpush1.bf16.msra.mxu0 0
  %166 = vmatprep.subr.bf16.mxu0 0
  %167 = vmatpush1.bf16.msra.mxu0 0
  %168 = vmatprep.subr.bf16.mxu0 0
  %169 = vmatpush1.bf16.msra.mxu0 0
  %170 = vmatprep.subr.bf16.mxu0 0
  %171 = vmatpush1.bf16.msra.mxu0 0
  %172 = vmatprep.subr.bf16.mxu0 0
  %173 = vmatpush1.bf16.msra.mxu0 0
  %174 = vmatprep.subr.bf16.mxu0 0
  %175 = vmatpush1.bf16.msra.mxu0 0
  %176 = vmatprep.mubr.bf16.mxu0 0
  %177 = vmatmul.mubr.bf16.gmra.mrb[0].mxu0 %v142
  %v178 = vpop.f32.mrb[0].mxu0
  %v179 = vadd.f32 %v43, %v178
  %v180 = vpop.f32.mrb[0].mxu0
  %v181 = vadd.f32 %v47, %v180
  %v182 = vpop.f32.mrb[0].mxu0
  %v183 = vpop.f32.mrb[0].mxu0
  %184 = vdwg.mxu0
  %185 = vmatprep.subr.bf16.mxu0 %v111
  %186 = vmatpush1.bf16.msra.mxu0 %v110
  %187 = vmatprep.subr.bf16.mxu0 %v115
  %188 = vmatpush1.bf16.msra.mxu0 %v114
  %189 = vmatprep.subr.bf16.mxu0 %v119
  %190 = vmatpush1.bf16.msra.mxu0 %v118
  %191 = vmatprep.subr.bf16.mxu0 %v123
  %192 = vmatpush1.bf16.msra.mxu0 %v122
  %193 = vmatprep.subr.bf16.mxu0 0
  %194 = vmatpush1.bf16.msra.mxu0 0
  %195 = vmatprep.subr.bf16.mxu0 0
  %196 = vmatpush1.bf16.msra.mxu0 0
  %197 = vmatprep.subr.bf16.mxu0 0
  %198 = vmatpush1.bf16.msra.mxu0 0
  %199 = vmatprep.subr.bf16.mxu0 0
  %200 = vmatpush1.bf16.msra.mxu0 0
  %201 = vmatprep.subr.bf16.mxu0 0
  %202 = vmatpush1.bf16.msra.mxu0 0
  %203 = vmatprep.subr.bf16.mxu0 0
  %204 = vmatpush1.bf16.msra.mxu0 0
  %205 = vmatprep.subr.bf16.mxu0 0
  %206 = vmatpush1.bf16.msra.mxu0 0
  %207 = vmatprep.subr.bf16.mxu0 0
  %208 = vmatpush1.bf16.msra.mxu0 0
  %209 = vmatprep.subr.bf16.mxu0 0
  %210 = vmatpush1.bf16.msra.mxu0 0
  %211 = vmatprep.subr.bf16.mxu0 0
  %212 = vmatpush1.bf16.msra.mxu0 0
  %213 = vmatprep.subr.bf16.mxu0 0
  %214 = vmatpush1.bf16.msra.mxu0 0
  %215 = vmatprep.subr.bf16.mxu0 0
  %216 = vmatpush1.bf16.msra.mxu0 0
  %217 = vmatprep.mubr.bf16.mxu0 0
  %218 = vmatmul.mubr.bf16.gmra.mrb[0].mxu0 %v142
  %v219 = vpop.f32.mrb[0].mxu0
  %v220 = vadd.f32 %v51, %v219
  %v221 = vpop.f32.mrb[0].mxu0
  %v222 = vadd.f32 %v55, %v221
  %v223 = vpop.f32.mrb[0].mxu0
  %v224 = vpop.f32.mrb[0].mxu0
  %225 = vdwg.mxu0
  %v226 = vmax.f32 %v179, 0.0
  %v227 = vmax.f32 %v181, 0.0
  %v228 = vmax.f32 %v220, 0.0
  %v229 = vmax.f32 %v222, 0.0
  %v230 = vpack.c.bf16 %v226, %v226
  %v231 = vpack.c.bf16 %v227, %v227
  %v232 = vpack.c.bf16 %v228, %v228
  %v233 = vpack.c.bf16 %v229, %v229
  %v234 = vld [vmem:[%s3] sm:$0xf]
  %v235 = vld [vmem:[%s3 + $0x4] sm:$0xf]
  %v236 = vld [vmem:[%s3 + $0x8] sm:$0xf]
  %v237 = vld [vmem:[%s3 + $0xc] sm:$0xf]
  %v238 = vld [vmem:[%s3 + $0x10] sm:$0xf]
  %v239 = vld [vmem:[%s3 + $0x14] sm:$0xf]
  %v240 = vld [vmem:[%s3 + $0x18] sm:$0xf]
  %v241 = vld [vmem:[%s3 + $0x1c] sm:$0xf]
  %v242 = vld [vmem:[%s3 + $0x20] sm:$0xf]
  %v243 = vld [vmem:[%s3 + $0x24] sm:$0xf]
  %v244 = vld [vmem:[%s3 + $0x28] sm:$0xf]
  %v245 = vld [vmem:[%s3 + $0x2c] sm:$0xf]
  %v246 = vld [vmem:[%s3 + $0x30] sm:$0xf]
  %v247 = vld [vmem:[%s3 + $0x34] sm:$0xf]
  %v248 = vld [vmem:[%s3 + $0x38] sm:$0xf]
  %v249 = vld [vmem:[%s3 + $0x3c] sm:$0xf]
  %v250 = vld [vmem:[%s3 + $0x40] sm:$0xf]
  %v251 = vld [vmem:[%s3 + $0x44] sm:$0xf]
  %v252 = vld [vmem:[%s3 + $0x48] sm:$0xf]
  %v253 = vld [vmem:[%s3 + $0x4c] sm:$0xf]
  %v254 = vld [vmem:[%s3 + $0x50] sm:$0xf]
  %v255 = vld [vmem:[%s3 + $0x54] sm:$0xf]
  %v256 = vld [vmem:[%s3 + $0x58] sm:$0xf]
  %v257 = vld [vmem:[%s3 + $0x5c] sm:$0xf]
  %v258 = vld [vmem:[%s3 + $0x60] sm:$0xf]
  %v259 = vld [vmem:[%s3 + $0x64] sm:$0xf]
  %v260 = vld [vmem:[%s3 + $0x68] sm:$0xf]
  %v261 = vld [vmem:[%s3 + $0x6c] sm:$0xf]
  %v262 = vld [vmem:[%s3 + $0x70] sm:$0xf]
  %v263 = vld [vmem:[%s3 + $0x74] sm:$0xf]
  %v264 = vld [vmem:[%s3 + $0x78] sm:$0xf]
  %v265 = vld [vmem:[%s3 + $0x7c] sm:$0xf]
  %v266 = vld [vmem:[%s3 + $0x80] sm:$0xf]
  %v267 = vld [vmem:[%s3 + $0x84] sm:$0xf]
  %v268 = vld [vmem:[%s3 + $0x88] sm:$0xf]
  %v269 = vld [vmem:[%s3 + $0x8c] sm:$0xf]
  %v270 = vld [vmem:[%s3 + $0x90] sm:$0xf]
  %v271 = vld [vmem:[%s3 + $0x94] sm:$0xf]
  %v272 = vld [vmem:[%s3 + $0x98] sm:$0xf]
  %v273 = vld [vmem:[%s3 + $0x9c] sm:$0xf]
  %v274 = vld [vmem:[%s3 + $0xa0] sm:$0xf]
  %v275 = vld [vmem:[%s3 + $0xa4] sm:$0xf]
  %v276 = vld [vmem:[%s3 + $0xa8] sm:$0xf]
  %v277 = vld [vmem:[%s3 + $0xac] sm:$0xf]
  %v278 = vld [vmem:[%s3 + $0xb0] sm:$0xf]
  %v279 = vld [vmem:[%s3 + $0xb4] sm:$0xf]
  %v280 = vld [vmem:[%s3 + $0xb8] sm:$0xf]
  %v281 = vld [vmem:[%s3 + $0xbc] sm:$0xf]
  %v282 = vld [vmem:[%s3 + $0xc0] sm:$0xf]
  %v283 = vld [vmem:[%s3 + $0xc4] sm:$0xf]
  %v284 = vld [vmem:[%s3 + $0xc8] sm:$0xf]
  %v285 = vld [vmem:[%s3 + $0xcc] sm:$0xf]
  %v286 = vld [vmem:[%s3 + $0xd0] sm:$0xf]
  %v287 = vld [vmem:[%s3 + $0xd4] sm:$0xf]
  %v288 = vld [vmem:[%s3 + $0xd8] sm:$0xf]
  %v289 = vld [vmem:[%s3 + $0xdc] sm:$0xf]
  %v290 = vld [vmem:[%s3 + $0xe0] sm:$0xf]
  %v291 = vld [vmem:[%s3 + $0xe4] sm:$0xf]
  %v292 = vld [vmem:[%s3 + $0xe8] sm:$0xf]
  %v293 = vld [vmem:[%s3 + $0xec] sm:$0xf]
  %v294 = vld [vmem:[%s3 + $0xf0] sm:$0xf]
  %v295 = vld [vmem:[%s3 + $0xf4] sm:$0xf]
  %v296 = vld [vmem:[%s3 + $0xf8] sm:$0xf]
  %v297 = vld [vmem:[%s3 + $0xfc] sm:$0xf]
  %v298 = vld [vmem:[%s4] sm:$0x1]
  %v300 = vlaneseq
  %v301 = vshrl.u32 %v300, 7
  %v302 = vsub.s32 0, %v301
  %v303 = vrot.slane %v298, %v302
  %v369 = vunpack.c.l.b16 %v234
  %v370 = vunpack.c.l.b16 %v235
  %v371 = vunpack.c.l.b16 %v236
  %v372 = vunpack.c.l.b16 %v237
  %v373 = vunpack.c.l.b16 %v238
  %v374 = vunpack.c.l.b16 %v239
  %v375 = vunpack.c.l.b16 %v240
  %v376 = vunpack.c.l.b16 %v241
  %v377 = vunpack.c.l.b16 %v242
  %v378 = vunpack.c.l.b16 %v243
  %v379 = vunpack.c.l.b16 %v244
  %v380 = vunpack.c.l.b16 %v245
  %v381 = vunpack.c.l.b16 %v246
  %v382 = vunpack.c.l.b16 %v247
  %v383 = vunpack.c.l.b16 %v248
  %v384 = vunpack.c.l.b16 %v249
  %v385 = vunpack.c.l.b16 %v250
  %v386 = vunpack.c.l.b16 %v251
  %v387 = vunpack.c.l.b16 %v252
  %v388 = vunpack.c.l.b16 %v253
  %v389 = vunpack.c.l.b16 %v254
  %v390 = vunpack.c.l.b16 %v255
  %v391 = vunpack.c.l.b16 %v256
  %v392 = vunpack.c.l.b16 %v257
  %v393 = vunpack.c.l.b16 %v258
  %v394 = vunpack.c.l.b16 %v259
  %v395 = vunpack.c.l.b16 %v260
  %v396 = vunpack.c.l.b16 %v261
  %v397 = vunpack.c.l.b16 %v262
  %v398 = vunpack.c.l.b16 %v263
  %v399 = vunpack.c.l.b16 %v264
  %v400 = vunpack.c.l.b16 %v265
  %v401 = vunpack.c.l.b16 %v266
  %v402 = vunpack.c.l.b16 %v267
  %v403 = vunpack.c.l.b16 %v268
  %v404 = vunpack.c.l.b16 %v269
  %v405 = vunpack.c.l.b16 %v270
  %v406 = vunpack.c.l.b16 %v271
  %v407 = vunpack.c.l.b16 %v272
  %v408 = vunpack.c.l.b16 %v273
  %v409 = vunpack.c.l.b16 %v274
  %v410 = vunpack.c.l.b16 %v275
  %v411 = vunpack.c.l.b16 %v276
  %v412 = vunpack.c.l.b16 %v277
  %v413 = vunpack.c.l.b16 %v278
  %v414 = vunpack.c.l.b16 %v279
  %v415 = vunpack.c.l.b16 %v280
  %v416 = vunpack.c.l.b16 %v281
  %v417 = vunpack.c.l.b16 %v282
  %v418 = vunpack.c.l.b16 %v283
  %v419 = vunpack.c.l.b16 %v284
  %v420 = vunpack.c.l.b16 %v285
  %v421 = vunpack.c.l.b16 %v286
  %v422 = vunpack.c.l.b16 %v287
  %v423 = vunpack.c.l.b16 %v288
  %v424 = vunpack.c.l.b16 %v289
  %v425 = vunpack.c.l.b16 %v290
  %v426 = vunpack.c.l.b16 %v291
  %v427 = vunpack.c.l.b16 %v292
  %v428 = vunpack.c.l.b16 %v293
  %v429 = vunpack.c.l.b16 %v294
  %v430 = vunpack.c.l.b16 %v295
  %v431 = vunpack.c.l.b16 %v296
  %v432 = vunpack.c.l.b16 %v297
  %v433 = vpack.c.b16 %v370, %v369
  %v434 = vpack.c.b16 %v372, %v371
  %v435 = vpack.c.b16 %v374, %v373
  %v436 = vpack.c.b16 %v376, %v375
  %v437 = vpack.c.b16 %v378, %v377
  %v438 = vpack.c.b16 %v380, %v379
  %v439 = vpack.c.b16 %v382, %v381
  %v440 = vpack.c.b16 %v384, %v383
  %v441 = vpack.c.b16 %v386, %v385
  %v442 = vpack.c.b16 %v388, %v387
  %v443 = vpack.c.b16 %v390, %v389
  %v444 = vpack.c.b16 %v392, %v391
  %v445 = vpack.c.b16 %v394, %v393
  %v446 = vpack.c.b16 %v396, %v395
  %v447 = vpack.c.b16 %v398, %v397
  %v448 = vpack.c.b16 %v400, %v399
  %v449 = vpack.c.b16 %v402, %v401
  %v450 = vpack.c.b16 %v404, %v403
  %v451 = vpack.c.b16 %v406, %v405
  %v452 = vpack.c.b16 %v408, %v407
  %v453 = vpack.c.b16 %v410, %v409
  %v454 = vpack.c.b16 %v412, %v411
  %v455 = vpack.c.b16 %v414, %v413
  %v456 = vpack.c.b16 %v416, %v415
  %v457 = vpack.c.b16 %v418, %v417
  %v458 = vpack.c.b16 %v420, %v419
  %v459 = vpack.c.b16 %v422, %v421
  %v460 = vpack.c.b16 %v424, %v423
  %v461 = vpack.c.b16 %v426, %v425
  %v462 = vpack.c.b16 %v428, %v427
  %v463 = vpack.c.b16 %v430, %v429
  %v464 = vpack.c.b16 %v432, %v431
  %497 = vmatprep.subr.bf16.mxu0 0
  %498 = vmatpush1.bf16.msra.mxu0 %v433
  %499 = vmatprep.subr.bf16.mxu0 0
  %500 = vmatpush1.bf16.msra.mxu0 %v434
  %501 = vmatprep.subr.bf16.mxu0 0
  %502 = vmatpush1.bf16.msra.mxu0 %v435
  %503 = vmatprep.subr.bf16.mxu0 0
  %504 = vmatpush1.bf16.msra.mxu0 %v436
  %505 = vmatprep.subr.bf16.mxu0 0
  %506 = vmatpush1.bf16.msra.mxu0 %v437
  %507 = vmatprep.subr.bf16.mxu0 0
  %508 = vmatpush1.bf16.msra.mxu0 %v438
  %509 = vmatprep.subr.bf16.mxu0 0
  %510 = vmatpush1.bf16.msra.mxu0 %v439
  %511 = vmatprep.subr.bf16.mxu0 0
  %512 = vmatpush1.bf16.msra.mxu0 %v440
  %513 = vmatprep.subr.bf16.mxu0 0
  %514 = vmatpush1.bf16.msra.mxu0 %v441
  %515 = vmatprep.subr.bf16.mxu0 0
  %516 = vmatpush1.bf16.msra.mxu0 %v442
  %517 = vmatprep.subr.bf16.mxu0 0
  %518 = vmatpush1.bf16.msra.mxu0 %v443
  %519 = vmatprep.subr.bf16.mxu0 0
  %520 = vmatpush1.bf16.msra.mxu0 %v444
  %521 = vmatprep.subr.bf16.mxu0 0
  %522 = vmatpush1.bf16.msra.mxu0 %v445
  %523 = vmatprep.subr.bf16.mxu0 0
  %524 = vmatpush1.bf16.msra.mxu0 %v446
  %525 = vmatprep.subr.bf16.mxu0 0
  %526 = vmatpush1.bf16.msra.mxu0 %v447
  %527 = vmatprep.subr.bf16.mxu0 0
  %528 = vmatpush1.bf16.msra.mxu0 %v448
  %529 = vmatprep.mubr.bf16.mxu0 %v231
  %530 = vmatmul.mubr.bf16.gmra.mrb[0].mxu0 %v230
  %v531 = vpop.f32.mrb[0].mxu0
  %v532 = vadd.f32 %v303, %v531
  %v533 = vpop.f32.mrb[0].mxu0
  %v534 = vpop.f32.mrb[0].mxu0
  %v535 = vpop.f32.mrb[0].mxu0
  %536 = vdwg.mxu0
  %537 = vmatprep.subr.bf16.mxu0 0
  %538 = vmatpush1.bf16.msra.mxu0 %v449
  %539 = vmatprep.subr.bf16.mxu0 0
  %540 = vmatpush1.bf16.msra.mxu0 %v450
  %541 = vmatprep.subr.bf16.mxu0 0
  %542 = vmatpush1.bf16.msra.mxu0 %v451
  %543 = vmatprep.subr.bf16.mxu0 0
  %544 = vmatpush1.bf16.msra.mxu0 %v452
  %545 = vmatprep.subr.bf16.mxu0 0
  %546 = vmatpush1.bf16.msra.mxu0 %v453
  %547 = vmatprep.subr.bf16.mxu0 0
  %548 = vmatpush1.bf16.msra.mxu0 %v454
  %549 = vmatprep.subr.bf16.mxu0 0
  %550 = vmatpush1.bf16.msra.mxu0 %v455
  %551 = vmatprep.subr.bf16.mxu0 0
  %552 = vmatpush1.bf16.msra.mxu0 %v456
  %553 = vmatprep.subr.bf16.mxu0 0
  %554 = vmatpush1.bf16.msra.mxu0 %v457
  %555 = vmatprep.subr.bf16.mxu0 0
  %556 = vmatpush1.bf16.msra.mxu0 %v458
  %557 = vmatprep.subr.bf16.mxu0 0
  %558 = vmatpush1.bf16.msra.mxu0 %v459
  %559 = vmatprep.subr.bf16.mxu0 0
  %560 = vmatpush1.bf16.msra.mxu0 %v460
  %561 = vmatprep.subr.bf16.mxu0 0
  %562 = vmatpush1.bf16.msra.mxu0 %v461
  %563 = vmatprep.subr.bf16.mxu0 0
  %564 = vmatpush1.bf16.msra.mxu0 %v462
  %565 = vmatprep.subr.bf16.mxu0 0
  %566 = vmatpush1.bf16.msra.mxu0 %v463
  %567 = vmatprep.subr.bf16.mxu0 0
  %568 = vmatpush1.bf16.msra.mxu0 %v464
  %569 = vmatprep.mubr.bf16.mxu0 %v233
  %570 = vmatmul.mubr.bf16.gmra.mrb[0].mxu0 %v232
  %v571 = vpop.f32.mrb[0].mxu0
  %v572 = vadd.f32 %v532, %v571
  %v573 = vpop.f32.mrb[0].mxu0
  %v574 = vpop.f32.mrb[0].mxu0
  %v575 = vpop.f32.mrb[0].mxu0
  %576 = vdwg.mxu0
  %577 = vst [vmem:[%s5] sm:$0xff] %v572
  // Predicated region
  $region22: #{dqn_forward.7} parent=0 // pred_check
    _
  $region23: #{dqn_forward.7} parent=0 // pred_check_branch
    %579 = sbr.rel (0) target = $region25
  $region24: #{dqn_forward.7} parent=0 // pred_region
    _
  $region25: #{dqn_forward.7} parent=0 // pred_fallthru
    _
  // Predicated region
  $region26: #{dqn_forward.7} parent=0 // pred_check
    _
  $region27: #{dqn_forward.7} parent=0 // pred_check_branch
    %581 = sbr.rel (0) target = $region29
  $region28: #{dqn_forward.7} parent=0 // pred_region
    _
  $region29: #{dqn_forward.7} parent=0 // pred_fallthru
    _

// kernel: dqn_forward.6
$region0: #{dqn_forward.6}
  #allocation0 [shape = 'u32[]', space=smem, size = 0x4, offset = 0x4, fixed_abs, tag = 'smem constant byte address 0x4 - core index']
  #allocation1 [shape = 'u32[144,128]{1,0:T(1,128)}', space=vmem, size = 0x12000, scoped, tag = 'internal scratch']
  %s0 = inlined_call_operand.vmem [shape: bf16[8,576], index: 0, kind: input, shape index: {}]
  %s1 = inlined_call_operand.vmem [shape: bf16[576,64], index: 1, kind: input, shape index: {}]
  %s2 = inlined_call_operand.vmem [shape: f32[1,64], index: 2, kind: input, shape index: {}]
  %s3 = inlined_call_operand.vmem [shape: bf16[8,64], index: 3, kind: output, shape index: {}]
  %s4 = sld [smem:[#allocation0]]
  $region22: #{dqn_forward.6} parent=0
    _
  %s6 = ssub.s32 1, %s4
  %s7 = scalar_select 0, %s6, %s4
  // Predicated region
  $region2: #{dqn_forward.6} parent=0 // pred_check
    _
  $region3: #{dqn_forward.6} parent=0 // pred_check_branch
    %9 = sbr.rel (0) target = $region5
  $region4: #{dqn_forward.6} parent=0 // pred_region
    _
  $region5: #{dqn_forward.6} parent=0 // pred_fallthru
    _
  // Predicated region
  $region6: #{dqn_forward.6} parent=0 // pred_check
    _
  $region7: #{dqn_forward.6} parent=0 // pred_check_branch
    %11 = sbr.rel (0) target = $region9
  $region8: #{dqn_forward.6} parent=0 // pred_region
    _
  $region9: #{dqn_forward.6} parent=0 // pred_fallthru
    _
  // Predicated region
  $region10: #{dqn_forward.6} parent=0 // pred_check
    _
  $region11: #{dqn_forward.6} parent=0 // pred_check_branch
    %13 = sbr.rel (0) target = $region13
  $region12: #{dqn_forward.6} parent=0 // pred_region
    _
  $region13: #{dqn_forward.6} parent=0 // pred_fallthru
    _
  %v15 = vld [vmem:[%s0] sm:$0xff]
  %v16 = vld [vmem:[%s0 + $0x8] sm:$0xff]
  %v17 = vld [vmem:[%s0 + $0x10] sm:$0xf]
  %v18 = vld [vmem:[%s1] sm:$0xf]
  %v19 = vld [vmem:[%s1 + $0x4] sm:$0xf]
  %v20 = vld [vmem:[%s1 + $0x8] sm:$0xf]
  %v21 = vld [vmem:[%s1 + $0xc] sm:$0xf]
  %v22 = vld [vmem:[%s1 + $0x10] sm:$0xf]
  %v23 = vld [vmem:[%s1 + $0x14] sm:$0xf]
  %v24 = vld [vmem:[%s1 + $0x18] sm:$0xf]
  %v25 = vld [vmem:[%s1 + $0x1c] sm:$0xf]
  %v26 = vld [vmem:[%s1 + $0x20] sm:$0xf]
  %v27 = vld [vmem:[%s1 + $0x24] sm:$0xf]
  %v28 = vld [vmem:[%s1 + $0x28] sm:$0xf]
  %v29 = vld [vmem:[%s1 + $0x2c] sm:$0xf]
  %v30 = vld [vmem:[%s1 + $0x30] sm:$0xf]
  %v31 = vld [vmem:[%s1 + $0x34] sm:$0xf]
  %v32 = vld [vmem:[%s1 + $0x38] sm:$0xf]
  %v33 = vld [vmem:[%s1 + $0x3c] sm:$0xf]
  %v34 = vld [vmem:[%s1 + $0x40] sm:$0xf]
  %v35 = vld [vmem:[%s1 + $0x44] sm:$0xf]
  %v36 = vld [vmem:[%s1 + $0x48] sm:$0xf]
  %v37 = vld [vmem:[%s1 + $0x4c] sm:$0xf]
  %v38 = vld [vmem:[%s1 + $0x50] sm:$0xf]
  %v39 = vld [vmem:[%s1 + $0x54] sm:$0xf]
  %v40 = vld [vmem:[%s1 + $0x58] sm:$0xf]
  %v41 = vld [vmem:[%s1 + $0x5c] sm:$0xf]
  %v42 = vld [vmem:[%s1 + $0x60] sm:$0xf]
  %v43 = vld [vmem:[%s1 + $0x64] sm:$0xf]
  %v44 = vld [vmem:[%s1 + $0x68] sm:$0xf]
  %v45 = vld [vmem:[%s1 + $0x6c] sm:$0xf]
  %v46 = vld [vmem:[%s1 + $0x70] sm:$0xf]
  %v47 = vld [vmem:[%s1 + $0x74] sm:$0xf]
  %v48 = vld [vmem:[%s1 + $0x78] sm:$0xf]
  %v49 = vld [vmem:[%s1 + $0x7c] sm:$0xf]
  %v50 = vld [vmem:[%s1 + $0x80] sm:$0xf]
  %v51 = vld [vmem:[%s1 + $0x84] sm:$0xf]
  %v52 = vld [vmem:[%s1 + $0x88] sm:$0xf]
  %v53 = vld [vmem:[%s1 + $0x8c] sm:$0xf]
  %v54 = vld [vmem:[%s1 + $0x90] sm:$0xf]
  %v55 = vld [vmem:[%s1 + $0x94] sm:$0xf]
  %v56 = vld [vmem:[%s1 + $0x98] sm:$0xf]
  %v57 = vld [vmem:[%s1 + $0x9c] sm:$0xf]
  %v58 = vld [vmem:[%s1 + $0xa0] sm:$0xf]
  %v59 = vld [vmem:[%s1 + $0xa4] sm:$0xf]
  %v60 = vld [vmem:[%s1 + $0xa8] sm:$0xf]
  %v61 = vld [vmem:[%s1 + $0xac] sm:$0xf]
  %v62 = vld [vmem:[%s1 + $0xb0] sm:$0xf]
  %v63 = vld [vmem:[%s1 + $0xb4] sm:$0xf]
  %v64 = vld [vmem:[%s1 + $0xb8] sm:$0xf]
  %v65 = vld [vmem:[%s1 + $0xbc] sm:$0xf]
  %v66 = vld [vmem:[%s1 + $0xc0] sm:$0xf]
  %v67 = vld [vmem:[%s1 + $0xc4] sm:$0xf]
  %v68 = vld [vmem:[%s1 + $0xc8] sm:$0xf]
  %v69 = vld [vmem:[%s1 + $0xcc] sm:$0xf]
  %v70 = vld [vmem:[%s1 + $0xd0] sm:$0xf]
  %v71 = vld [vmem:[%s1 + $0xd4] sm:$0xf]
  %v72 = vld [vmem:[%s1 + $0xd8] sm:$0xf]
  %v73 = vld [vmem:[%s1 + $0xdc] sm:$0xf]
  %v74 = vld [vmem:[%s1 + $0xe0] sm:$0xf]
  %v75 = vld [vmem:[%s1 + $0xe4] sm:$0xf]
  %v76 = vld [vmem:[%s1 + $0xe8] sm:$0xf]
  %v77 = vld [vmem:[%s1 + $0xec] sm:$0xf]
  %v78 = vld [vmem:[%s1 + $0xf0] sm:$0xf]
  %v79 = vld [vmem:[%s1 + $0xf4] sm:$0xf]
  %v80 = vld [vmem:[%s1 + $0xf8] sm:$0xf]
  %v81 = vld [vmem:[%s1 + $0xfc] sm:$0xf]
  %v82 = vld [vmem:[%s1 + $0x100] sm:$0xf]
  %v83 = vld [vmem:[%s1 + $0x104] sm:$0xf]
  %v84 = vld [vmem:[%s1 + $0x108] sm:$0xf]
  %v85 = vld [vmem:[%s1 + $0x10c] sm:$0xf]
  %v86 = vld [vmem:[%s1 + $0x110] sm:$0xf]
  %v87 = vld [vmem:[%s1 + $0x114] sm:$0xf]
  %v88 = vld [vmem:[%s1 + $0x118] sm:$0xf]
  %v89 = vld [vmem:[%s1 + $0x11c] sm:$0xf]
  %v90 = vld [vmem:[%s2] sm:$0x1]
  %v92 = vlaneseq
  %v93 = vshrl.u32 %v92, 7
  %v94 = vsub.s32 0, %v93
  %v95 = vrot.slane %v90, %v94
  %v100 = vunpack.c.l.b16 %v15
  %v101 = vunpack.c.h.b16 %v15
  %v102 = vunpack.c.l.b16 %v16
  %v103 = vunpack.c.h.b16 %v16
  %v104 = vunpack.c.l.b16 %v17
  %v105 = vpack.c.b16 %v100, %v100
  %v106 = vpack.c.b16 %v101, %v101
  %v107 = vpack.c.b16 %v102, %v102
  %v108 = vpack.c.b16 %v103, %v103
  %v109 = vpack.c.b16 %v104, %v104
  %v186 = vunpack.c.l.b16 %v18
  %v187 = vunpack.c.l.b16 %v19
  %v188 = vunpack.c.l.b16 %v20
  %v189 = vunpack.c.l.b16 %v21
  %v190 = vunpack.c.l.b16 %v22
  %v191 = vunpack.c.l.b16 %v23
  %v192 = vunpack.c.l.b16 %v24
  %v193 = vunpack.c.l.b16 %v25
  %v194 = vunpack.c.l.b16 %v26
  %v195 = vunpack.c.l.b16 %v27
  %v196 = vunpack.c.l.b16 %v28
  %v197 = vunpack.c.l.b16 %v29
  %v198 = vunpack.c.l.b16 %v30
  %v199 = vunpack.c.l.b16 %v31
  %v200 = vunpack.c.l.b16 %v32
  %v201 = vunpack.c.l.b16 %v33
  %v202 = vunpack.c.l.b16 %v34
  %v203 = vunpack.c.l.b16 %v35
  %v204 = vunpack.c.l.b16 %v36
  %v205 = vunpack.c.l.b16 %v37
  %v206 = vunpack.c.l.b16 %v38
  %v207 = vunpack.c.l.b16 %v39
  %v208 = vunpack.c.l.b16 %v40
  %v209 = vunpack.c.l.b16 %v41
  %v210 = vunpack.c.l.b16 %v42
  %v211 = vunpack.c.l.b16 %v43
  %v212 = vunpack.c.l.b16 %v44
  %v213 = vunpack.c.l.b16 %v45
  %v214 = vunpack.c.l.b16 %v46
  %v215 = vunpack.c.l.b16 %v47
  %v216 = vunpack.c.l.b16 %v48
  %v217 = vunpack.c.l.b16 %v49
  %v218 = vunpack.c.l.b16 %v50
  %v219 = vunpack.c.l.b16 %v51
  %v220 = vunpack.c.l.b16 %v52
  %v221 = vunpack.c.l.b16 %v53
  %v222 = vunpack.c.l.b16 %v54
  %v223 = vunpack.c.l.b16 %v55
  %v224 = vunpack.c.l.b16 %v56
  %v225 = vunpack.c.l.b16 %v57
  %v226 = vunpack.c.l.b16 %v58
  %v227 = vunpack.c.l.b16 %v59
  %v228 = vunpack.c.l.b16 %v60
  %v229 = vunpack.c.l.b16 %v61
  %v230 = vunpack.c.l.b16 %v62
  %v231 = vunpack.c.l.b16 %v63
  %v232 = vunpack.c.l.b16 %v64
  %v233 = vunpack.c.l.b16 %v65
  %v234 = vunpack.c.l.b16 %v66
  %v235 = vunpack.c.l.b16 %v67
  %v236 = vunpack.c.l.b16 %v68
  %v237 = vunpack.c.l.b16 %v69
  %v238 = vunpack.c.l.b16 %v70
  %v239 = vunpack.c.l.b16 %v71
  %v240 = vunpack.c.l.b16 %v72
  %v241 = vunpack.c.l.b16 %v73
  %v242 = vunpack.c.l.b16 %v74
  %v243 = vunpack.c.l.b16 %v75
  %v244 = vunpack.c.l.b16 %v76
  %v245 = vunpack.c.l.b16 %v77
  %v246 = vunpack.c.l.b16 %v78
  %v247 = vunpack.c.l.b16 %v79
  %v248 = vunpack.c.l.b16 %v80
  %v249 = vunpack.c.l.b16 %v81
  %v250 = vunpack.c.l.b16 %v82
  %v251 = vunpack.c.l.b16 %v83
  %v252 = vunpack.c.l.b16 %v84
  %v253 = vunpack.c.l.b16 %v85
  %v254 = vunpack.c.l.b16 %v86
  %v255 = vunpack.c.l.b16 %v87
  %v256 = vunpack.c.l.b16 %v88
  %v257 = vunpack.c.l.b16 %v89
  %v258 = vpack.c.b16 %v187, %v186
  %v259 = vpack.c.b16 %v189, %v188
  %v260 = vpack.c.b16 %v191, %v190
  %v261 = vpack.c.b16 %v193, %v192
  %v262 = vpack.c.b16 %v195, %v194
  %v263 = vpack.c.b16 %v197, %v196
  %v264 = vpack.c.b16 %v199, %v198
  %v265 = vpack.c.b16 %v201, %v200
  %v266 = vpack.c.b16 %v203, %v202
  %v267 = vpack.c.b16 %v205, %v204
  %v268 = vpack.c.b16 %v207, %v206
  %v269 = vpack.c.b16 %v209, %v208
  %v270 = vpack.c.b16 %v211, %v210
  %v271 = vpack.c.b16 %v213, %v212
  %v272 = vpack.c.b16 %v215, %v214
  %v273 = vpack.c.b16 %v217, %v216
  %v274 = vpack.c.b16 %v219, %v218
  %v275 = vpack.c.b16 %v221, %v220
  %v276 = vpack.c.b16 %v223, %v222
  %v277 = vpack.c.b16 %v225, %v224
  %v278 = vpack.c.b16 %v227, %v226
  %v279 = vpack.c.b16 %v229, %v228
  %v280 = vpack.c.b16 %v231, %v230
  %v281 = vpack.c.b16 %v233, %v232
  %v282 = vpack.c.b16 %v235, %v234
  %v283 = vpack.c.b16 %v237, %v236
  %v284 = vpack.c.b16 %v239, %v238
  %v285 = vpack.c.b16 %v241, %v240
  %v286 = vpack.c.b16 %v243, %v242
  %v287 = vpack.c.b16 %v245, %v244
  %v288 = vpack.c.b16 %v247, %v246
  %v289 = vpack.c.b16 %v249, %v248
  %v290 = vpack.c.b16 %v251, %v250
  %v291 = vpack.c.b16 %v253, %v252
  %v292 = vpack.c.b16 %v255, %v254
  %v293 = vpack.c.b16 %v257, %v256
  %vm330 = vcmask 523264
  %v332 = vsel %vm330, %v109, 0
  %334 = vmatprep.subr.bf16.mxu0 0
  %335 = vmatpush1.bf16.msra.mxu0 %v258
  %336 = vmatprep.subr.bf16.mxu0 0
  %337 = vmatpush1.bf16.msra.mxu0 %v259
  %338 = vmatprep.subr.bf16.mxu0 0
  %339 = vmatpush1.bf16.msra.mxu0 %v260
  %340 = vmatprep.subr.bf16.mxu0 0
  %341 = vmatpush1.bf16.msra.mxu0 %v261
  %342 = vmatprep.subr.bf16.mxu0 0
  %343 = vmatpush1.bf16.msra.mxu0 %v262
  %344 = vmatprep.subr.bf16.mxu0 0
  %345 = vmatpush1.bf16.msra.mxu0 %v263
  %346 = vmatprep.subr.bf16.mxu0 0
  %347 = vmatpush1.bf16.msra.mxu0 %v264
  %348 = vmatprep.subr.bf16.mxu0 0
  %349 = vmatpush1.bf16.msra.mxu0 %v265
  %350 = vmatprep.subr.bf16.mxu0 0
  %351 = vmatpush1.bf16.msra.mxu0 %v266
  %352 = vmatprep.subr.bf16.mxu0 0
  %353 = vmatpush1.bf16.msra.mxu0 %v267
  %354 = vmatprep.subr.bf16.mxu0 0
  %355 = vmatpush1.bf16.msra.mxu0 %v268
  %356 = vmatprep.subr.bf16.mxu0 0
  %357 = vmatpush1.bf16.msra.mxu0 %v269
  %358 = vmatprep.subr.bf16.mxu0 0
  %359 = vmatpush1.bf16.msra.mxu0 %v270
  %360 = vmatprep.subr.bf16.mxu0 0
  %361 = vmatpush1.bf16.msra.mxu0 %v271
  %362 = vmatprep.subr.bf16.mxu0 0
  %363 = vmatpush1.bf16.msra.mxu0 %v272
  %364 = vmatprep.subr.bf16.mxu0 0
  %365 = vmatpush1.bf16.msra.mxu0 %v273
  %366 = vmatprep.mubr.bf16.mxu0 %v106
  %367 = vmatmul.mubr.bf16.gmra.mrb[0].mxu0 %v105
  %v368 = vpop.f32.mrb[0].mxu0
  %v369 = vadd.f32 %v95, %v368
  %v370 = vpop.f32.mrb[0].mxu0
  %v371 = vpop.f32.mrb[0].mxu0
  %v372 = vpop.f32.mrb[0].mxu0
  %373 = vdwg.mxu0
  %374 = vmatprep.subr.bf16.mxu0 0
  %375 = vmatpush1.bf16.msra.mxu0 %v274
  %376 = vmatprep.subr.bf16.mxu0 0
  %377 = vmatpush1.bf16.msra.mxu0 %v275
  %378 = vmatprep.subr.bf16.mxu0 0
  %379 = vmatpush1.bf16.msra.mxu0 %v276
  %380 = vmatprep.subr.bf16.mxu0 0
  %381 = vmatpush1.bf16.msra.mxu0 %v277
  %382 = vmatprep.subr.bf16.mxu0 0
  %383 = vmatpush1.bf16.msra.mxu0 %v278
  %384 = vmatprep.subr.bf16.mxu0 0
  %385 = vmatpush1.bf16.msra.mxu0 %v279
  %386 = vmatprep.subr.bf16.mxu0 0
  %387 = vmatpush1.bf16.msra.mxu0 %v280
  %388 = vmatprep.subr.bf16.mxu0 0
  %389 = vmatpush1.bf16.msra.mxu0 %v281
  %390 = vmatprep.subr.bf16.mxu0 0
  %391 = vmatpush1.bf16.msra.mxu0 %v282
  %392 = vmatprep.subr.bf16.mxu0 0
  %393 = vmatpush1.bf16.msra.mxu0 %v283
  %394 = vmatprep.subr.bf16.mxu0 0
  %395 = vmatpush1.bf16.msra.mxu0 %v284
  %396 = vmatprep.subr.bf16.mxu0 0
  %397 = vmatpush1.bf16.msra.mxu0 %v285
  %398 = vmatprep.subr.bf16.mxu0 0
  %399 = vmatpush1.bf16.msra.mxu0 %v286
  %400 = vmatprep.subr.bf16.mxu0 0
  %401 = vmatpush1.bf16.msra.mxu0 %v287
  %402 = vmatprep.subr.bf16.mxu0 0
  %403 = vmatpush1.bf16.msra.mxu0 %v288
  %404 = vmatprep.subr.bf16.mxu0 0
  %405 = vmatpush1.bf16.msra.mxu0 %v289
  %406 = vmatprep.mubr.bf16.mxu0 %v108
  %407 = vmatmul.mubr.bf16.gmra.mrb[0].mxu0 %v107
  %v408 = vpop.f32.mrb[0].mxu0
  %v409 = vadd.f32 %v369, %v408
  %v410 = vpop.f32.mrb[0].mxu0
  %v411 = vpop.f32.mrb[0].mxu0
  %v412 = vpop.f32.mrb[0].mxu0
  %413 = vdwg.mxu0
  %414 = vmatprep.subr.bf16.mxu0 0
  %415 = vmatpush1.bf16.msra.mxu0 %v290
  %416 = vmatprep.subr.bf16.mxu0 0
  %417 = vmatpush1.bf16.msra.mxu0 %v291
  %418 = vmatprep.subr.bf16.mxu0 0
  %419 = vmatpush1.bf16.msra.mxu0 %v292
  %420 = vmatprep.subr.bf16.mxu0 0
  %421 = vmatpush1.bf16.msra.mxu0 %v293
  %422 = vmatprep.subr.bf16.mxu0 0
  %423 = vmatpush1.bf16.msra.mxu0 0
  %424 = vmatprep.subr.bf16.mxu0 0
  %425 = vmatpush1.bf16.msra.mxu0 0
  %426 = vmatprep.subr.bf16.mxu0 0
  %427 = vmatpush1.bf16.msra.mxu0 0
  %428 = vmatprep.subr.bf16.mxu0 0
  %429 = vmatpush1.bf16.msra.mxu0 0
  %430 = vmatprep.subr.bf16.mxu0 0
  %431 = vmatpush1.bf16.msra.mxu0 0
  %432 = vmatprep.subr.bf16.mxu0 0
  %433 = vmatpush1.bf16.msra.mxu0 0
  %434 = vmatprep.subr.bf16.mxu0 0
  %435 = vmatpush1.bf16.msra.mxu0 0
  %436 = vmatprep.subr.bf16.mxu0 0
  %437 = vmatpush1.bf16.msra.mxu0 0
  %438 = vmatprep.subr.bf16.mxu0 0
  %439 = vmatpush1.bf16.msra.mxu0 0
  %440 = vmatprep.subr.bf16.mxu0 0
  %441 = vmatpush1.bf16.msra.mxu0 0
  %442 = vmatprep.subr.bf16.mxu0 0
  %443 = vmatpush1.bf16.msra.mxu0 0
  %444 = vmatprep.subr.bf16.mxu0 0
  %445 = vmatpush1.bf16.msra.mxu0 0
  %446 = vmatprep.mubr.bf16.mxu0 0
  %447 = vmatmul.mubr.bf16.gmra.mrb[0].mxu0 %v332
  %v448 = vpop.f32.mrb[0].mxu0
  %v449 = vadd.f32 %v409, %v448
  %v450 = vpop.f32.mrb[0].mxu0
  %v451 = vpop.f32.mrb[0].mxu0
  %v452 = vpop.f32.mrb[0].mxu0
  %453 = vdwg.mxu0
  %v454 = vmax.f32 %v449, 0.0
  %v455 = vpack.c.bf16 %v454, %v454
  %vm456 = vcmask 519168
  %457 = vst.msk [vmem:[%s3] sm:$0xf] %vm456, %v455
  // Predicated region
  $region14: #{dqn_forward.6} parent=0 // pred_check
    _
  $region15: #{dqn_forward.6} parent=0 // pred_check_branch
    %459 = sbr.rel (0) target = $region17
  $region16: #{dqn_forward.6} parent=0 // pred_region
    _
  $region17: #{dqn_forward.6} parent=0 // pred_fallthru
    _
  // Predicated region
  $region18: #{dqn_forward.6} parent=0 // pred_check
    _
  $region19: #{dqn_forward.6} parent=0 // pred_check_branch
    %461 = sbr.rel (0) target = $region21
  $region20: #{dqn_forward.6} parent=0 // pred_region
    _
  $region21: #{dqn_forward.6} parent=0 // pred_fallthru
    _

</llo_original>
